<compile_context>
chip_gen: v7x
topology: tpu7x:2x2x1
jax: 0.10.0
libtpu: 0.0.40
codegen_flags: <defaults>
</compile_context>

<pallas_src>
import functools
import math

import jax
import jax.numpy as jnp
from jax.experimental import pallas as pl
from jax.experimental.pallas import tpu as pltpu


def _round_up(x, m):
    return pl.cdiv(x, m) * m


# ----------------------------------------------------------------------------
# Fused DUC kernel (single grid step, everything resident in VMEM)
# ----------------------------------------------------------------------------
def _duc_fused_kernel(x_ref, w1_ref, b1_ref, pool_ref,
                      wa0_ref, ba0_ref, wa1_ref, ba1_ref, wa3_ref, ba3_ref,
                      bcast_ref, w2_ref, b2_ref, o_ref):
    # conv1 (1x1) == one MXU matmul with f32 accumulation; bias in f32.
    h = jnp.dot(x_ref[...], w1_ref[...],
                preferred_element_type=jnp.float32) + b1_ref[...]          # (M, Cout)

    # AdaptiveAvgPool2d(1): per-batch mean over the H*W rows, expressed as a
    # tiny matmul against a constant (Bp, M) pooling matrix (no reshapes).
    gap = jnp.dot(pool_ref[...], h, preferred_element_type=jnp.float32)    # (Bp, Cout)

    # ChannelAttention on the 1x1 GAP map.  The 3x3 / pad=1 conv collapses to
    # its centre tap because its input is spatially 1x1 (all other taps hit
    # zero padding) -- exact, not an approximation.
    a = jnp.dot(gap, wa0_ref[...], preferred_element_type=jnp.float32) + ba0_ref[...]
    a = jnp.dot(a, wa1_ref[...], preferred_element_type=jnp.float32) + ba1_ref[...]
    a = jnp.maximum(a, 0.0)
    a = jnp.dot(a, wa3_ref[...], preferred_element_type=jnp.float32) + ba3_ref[...]  # (Bp, Cout)

    # Broadcast the per-(batch, channel) attention back to rows and scale.
    scale = jnp.dot(bcast_ref[...], a, preferred_element_type=jnp.float32)  # (M, Cout)
    hs = (h * scale).astype(w2_ref.dtype)

    # conv2 folded pre-pixel-shuffle via a block-diagonal weight:
    # K = Cout (full MXU depth), lane-dense N = r^2 * Cout2.
    o_ref[...] = (jnp.dot(hs, w2_ref[...], preferred_element_type=jnp.float32)
                  + b2_ref[...]).astype(o_ref.dtype)


# ----------------------------------------------------------------------------
# Tiled matmul + bias (+ optional ReLU) fallback for large feature maps
# ----------------------------------------------------------------------------
def _make_mm_kernel(relu, accumulate):
    if accumulate:      # K grid > 1: VMEM f32 accumulator (only for K > 1024)
        def kernel(x_ref, w_ref, b_ref, o_ref, acc_ref):
            @pl.when(pl.program_id(2) == 0)
            def _():
                acc_ref[...] = jnp.zeros_like(acc_ref)

            acc_ref[...] += jnp.dot(x_ref[...], w_ref[...],
                                    preferred_element_type=jnp.float32)

            @pl.when(pl.program_id(2) == pl.num_programs(2) - 1)
            def _():
                r = acc_ref[...] + b_ref[...]
                if relu:
                    r = jnp.maximum(r, 0.0)
                o_ref[...] = r.astype(o_ref.dtype)
    else:               # K grid == 1 (common case): no zero-init / RMW / copy
        def kernel(x_ref, w_ref, b_ref, o_ref):
            r = jnp.dot(x_ref[...], w_ref[...],
                        preferred_element_type=jnp.float32) + b_ref[...]
            if relu:
                r = jnp.maximum(r, 0.0)
            o_ref[...] = r.astype(o_ref.dtype)
    return kernel


def matmul_bias(x, w, b, *, relu=False, out_dtype=jnp.float32):
    """out = relu?(x @ w + b).  x:(M,K), w:(K,N) pre-cast to the MXU dtype,
    b:(N,)/(1,N) f32.  Returns (M,N) in out_dtype."""
    M, K = x.shape
    K2, N = w.shape
    assert K == K2, (x.shape, w.shape)
    b2d = jnp.reshape(b, (1, N)).astype(jnp.float32)

    m_align = 16 if x.dtype == jnp.bfloat16 else 8
    Mp = _round_up(M, m_align)
    # 512-wide tiles: ~3 MB double-buffered working set, far below the 32 MiB
    # scoped-VMEM default (and v7x's 64 MiB physical VMEM), while amortizing
    # the ~0.35 us per-grid-step overhead on big feature maps.  Raise
    # vmem_limit_bytes in CompilerParams before going past ~2048-wide tiles.
    tm = min(Mp, 512)
    Mp = _round_up(Mp, tm)
    Np = _round_up(N, 128)
    tn = min(Np, 512)
    Np = _round_up(Np, tn)
    if K <= 1024:
        Kp, tk = K, K                    # single full-extent K step, no padding
    else:
        tk = 512
        Kp = _round_up(K, tk)

    xp = x if (Mp == M and Kp == K) else jnp.pad(x, ((0, Mp - M), (0, Kp - K)))
    wp = w if (Kp == K and Np == N) else jnp.pad(w, ((0, Kp - K), (0, Np - N)))
    bp = b2d if Np == N else jnp.pad(b2d, ((0, 0), (0, Np - N)))

    kgrid = Kp // tk
    accumulate = kgrid > 1
    scratch = [pltpu.VMEM((tm, tn), jnp.float32)] if accumulate else []

    out = pl.pallas_call(
        _make_mm_kernel(relu, accumulate),
        out_shape=jax.ShapeDtypeStruct((Mp, Np), out_dtype),
        grid_spec=pltpu.PrefetchScalarGridSpec(
            num_scalar_prefetch=0,
            grid=(Mp // tm, Np // tn, kgrid),
            in_specs=[
                pl.BlockSpec((tm, tk), lambda i, j, k: (i, k)),
                pl.BlockSpec((tk, tn), lambda i, j, k: (k, j)),
                # bias: first dim is exactly 1 == full extent (keep invariant)
                pl.BlockSpec((1, tn), lambda i, j, k: (0, j)),
            ],
            out_specs=pl.BlockSpec((tm, tn), lambda i, j, k: (i, j)),
            scratch_shapes=scratch,
        ),
        compiler_params=pltpu.CompilerParams(
            # parallel M/N lets v7x's two TensorCores split independent tiles;
            # the K axis (single step here) stays arbitrary.
            dimension_semantics=("parallel", "parallel", "arbitrary")),
    )(xp, wp, bp)

    if Mp == M and Np == N:
        return out
    return out[:M, :N]


# ----------------------------------------------------------------------------
# Parameter init (PyTorch Conv2d default) and one-time weight packing
# ----------------------------------------------------------------------------
def init_duc_params(key, in_channel, out_channel, reduction=8):
    assert out_channel % reduction == 0 and in_channel % 4 == 0

    def conv_init(k, cout, cin, kh, kw):
        fan_in = cin * kh * kw
        kw_, kb_ = jax.random.split(k)
        bound = math.sqrt(1.0 / fan_in)
        w = jax.random.uniform(kw_, (cout, cin, kh, kw), jnp.float32, -bound, bound)
        b = jax.random.uniform(kb_, (cout,), jnp.float32, -bound, bound)
        return w, b

    ks = jax.random.split(key, 5)
    r = out_channel // reduction
    return {
        "conv1": conv_init(ks[0], out_channel, in_channel, 1, 1),
        "ca0":   conv_init(ks[1], r, out_channel, 1, 1),
        "ca1":   conv_init(ks[2], r, r, 3, 3),
        "ca3":   conv_init(ks[3], out_channel, r, 1, 1),
        "conv2": conv_init(ks[4], out_channel, in_channel // 4, 1, 1),
    }


def prepare_duc_params(params, *, factor, use_bf16=True):
    """Pack / pre-cast weights ONCE outside the jitted forward (review #3)."""
    mxu = jnp.bfloat16 if use_bf16 else jnp.float32
    f32 = jnp.float32
    r, r2 = factor, factor * factor
    w1, b1 = params["conv1"]
    wa0, ba0 = params["ca0"]
    wa1, ba1 = params["ca1"]
    wa3, ba3 = params["ca3"]
    w2, b2 = params["conv2"]

    cout, cin = w1.shape[0], w1.shape[1]
    cr = wa0.shape[0]
    crp = _round_up(max(cr, 128), 128)       # pad attention hidden dim to full lanes
    cout2, cin2 = w2.shape[0], w2.shape[1]
    assert cin2 * r2 == cout, "pixel-shuffle / conv2 channel mismatch"

    # Attention matrices (exact: padded hidden channels stay 0 end-to-end).
    wa0m = jnp.zeros((cout, crp), f32).at[:, :cr].set(wa0.reshape(cr, cout).T)
    ba0v = jnp.zeros((1, crp), f32).at[:, :cr].set(ba0)
    wa1m = jnp.zeros((crp, crp), f32).at[:cr, :cr].set(wa1[:, :, 1, 1].T)  # centre tap
    ba1v = jnp.zeros((1, crp), f32).at[:, :cr].set(ba1)
    wa3m = jnp.zeros((crp, cout), f32).at[:cr, :].set(wa3.reshape(cout, cr).T)
    ba3v = ba3.reshape(1, cout).astype(f32)

    # conv2 folded to a pre-pixel-shuffle block-diagonal matrix (review #4):
    # w2big[c*r2 + p, p*Cout2 + o] = w2[o, c].
    w2mat = w2.reshape(cout2, cin2).T                                    # (cin2, cout2)
    w2big = jnp.einsum("co,pq->cpqo", w2mat, jnp.eye(r2, dtype=f32))
    w2big = w2big.reshape(cin2 * r2, r2 * cout2).astype(mxu)
    b2big = jnp.tile(b2, r2).reshape(1, r2 * cout2).astype(f32)

    return {
        "w1": w1.reshape(cout, cin).T.astype(mxu),
        "b1": b1.reshape(1, cout).astype(f32),
        "wa0": wa0m, "ba0": ba0v, "wa1": wa1m, "ba1": ba1v,
        "wa3": wa3m, "ba3": ba3v,
        "w2": w2big, "b2": b2big,
    }


# ----------------------------------------------------------------------------
# DUC forward (NCHW in / NCHW out, matching the PyTorch module)
# ----------------------------------------------------------------------------
_MAX_FUSED_ROWS = 1024     # B*H*W up to this -> whole DUC in one pallas_call


@functools.partial(jax.jit, static_argnames=("factor",))
def duc_forward(prep, x_nchw, *, factor=2):
    r, r2 = factor, factor * factor
    B, Cin, H, W = x_nchw.shape
    Nbig = prep["b2"].shape[1]
    Cout2 = Nbig // r2
    mxu_dtype = prep["w1"].dtype
    M = B * H * W
    Cout = prep["b1"].shape[1]

    # NCHW -> NHWC rows; the transpose and bf16 cast fuse into one XLA pass.
    x = jnp.transpose(x_nchw, (0, 2, 3, 1)).reshape(M, Cin).astype(mxu_dtype)

    if M <= _MAX_FUSED_ROWS:
        # ---- fused single-kernel path: intermediate never leaves VMEM ----
        Bp = _round_up(B, 8)
        row_batch = jnp.arange(M, dtype=jnp.int32) // (H * W)
        bcast = (row_batch[:, None] == jnp.arange(Bp)[None, :]).astype(jnp.float32)
        pool = bcast.T / float(H * W)         # (Bp, M): per-batch GAP weights
        z = pl.pallas_call(
            _duc_fused_kernel,
            out_shape=jax.ShapeDtypeStruct((M, Nbig), jnp.float32),
        )(x, prep["w1"], prep["b1"], pool,
          prep["wa0"], prep["ba0"], prep["wa1"], prep["ba1"],
          prep["wa3"], prep["ba3"], bcast, prep["w2"], prep["b2"])
    else:
        # ---- tiled two-kernel fallback for large feature maps ----
        # conv1 emits bf16 to halve the intermediate HBM round trip (review #2).
        h = matmul_bias(x, prep["w1"], prep["b1"], out_dtype=mxu_dtype)       # (M, Cout)
        h3 = h.reshape(B, H * W, Cout).astype(jnp.float32)
        gap = jnp.mean(h3, axis=1)                                            # (B, Cout)
        a = gap @ prep["wa0"] + prep["ba0"]
        a = a @ prep["wa1"] + prep["ba1"]
        a = jnp.maximum(a, 0.0)
        a = a @ prep["wa3"] + prep["ba3"]                                     # (B, Cout)
        hs = (h3 * a[:, None, :]).reshape(M, Cout).astype(mxu_dtype)
        z = matmul_bias(hs, prep["w2"], prep["b2"], out_dtype=jnp.float32)    # (M, r2*Cout2)

    # z[(b,h,w), (i*r+j)*Cout2 + o] -> out[b, o, h*r+i, w*r+j].  XLA fuses this
    # un-shuffle with the final NHWC->NCHW transpose into one relayout.
    z = z.reshape(B, H, W, r, r, Cout2)
    z = jnp.transpose(z, (0, 1, 3, 2, 4, 5)).reshape(B, H * r, W * r, Cout2)
    return jnp.transpose(z, (0, 3, 1, 2))


# ----------------------------------------------------------------------------
# Pure-XLA f32 reference (straight port of the PyTorch module) for self-check
# ----------------------------------------------------------------------------
def duc_reference(params, x_nchw, factor):
    def conv1x1(x, w, b):
        return jnp.einsum("bihw,oi->bohw", x, w[:, :, 0, 0]) + b[None, :, None, None]

    w1, b1 = params["conv1"]
    wa0, ba0 = params["ca0"]
    wa1, ba1 = params["ca1"]
    wa3, ba3 = params["ca3"]
    w2, b2 = params["conv2"]

    y = conv1x1(x_nchw, w1, b1)
    gap = jnp.mean(y, axis=(2, 3), keepdims=True)
    a = conv1x1(gap, wa0, ba0)
    ap = jnp.pad(a, ((0, 0), (0, 0), (1, 1), (1, 1)))                 # 3x3, pad=1
    a = jnp.einsum("bikl,oikl->bo", ap, wa1)[:, :, None, None] + ba1[None, :, None, None]
    a = jnp.maximum(a, 0.0)
    a = conv1x1(a, wa3, ba3)
    y = y * a
    B, C, H, W = y.shape
    r = factor
    y = y.reshape(B, C // (r * r), r, r, H, W)
    y = jnp.transpose(y, (0, 1, 4, 2, 5, 3)).reshape(B, C // (r * r), H * r, W * r)
    return conv1x1(y, w2, b2)


# ----------------------------------------------------------------------------
# Demo
# ----------------------------------------------------------------------------
if __name__ == "__main__":
    key = jax.random.PRNGKey(0)
    kp, kx1, kx2 = jax.random.split(key, 3)

    in_ch = out_ch = 256      # DUC is used with in_channel == out_channel (FPN neck)
    factor = 2

    params = init_duc_params(kp, in_ch, out_ch)
    prep = prepare_duc_params(params, factor=factor, use_bf16=True)

    def run_and_check(x):
        out = duc_forward(prep, x, factor=factor)
        jax.block_until_ready(out)
        ref = duc_reference(params, x, factor)
        err = float(jnp.max(jnp.abs(out - ref)))
        scale = float(jnp.max(jnp.abs(ref)))
        assert err <= 5e-2 * scale + 1e-3, (err, scale)   # bf16-level tolerance
        return out

    # Small map -> fused single-kernel path.
    x_small = jax.random.normal(kx1, (2, in_ch, 8, 8), jnp.float32)
    out_small = run_and_check(x_small)
    assert out_small.shape == (2, out_ch, 8 * factor, 8 * factor), out_small.shape

    # Larger map -> tiled two-kernel fallback path.
    x_large = jax.random.normal(kx2, (2, in_ch, 32, 32), jnp.float32)
    out_large = run_and_check(x_large)
    assert out_large.shape == (2, out_ch, 32 * factor, 32 * factor), out_large.shape

    print("KERNEL_OK")
</pallas_src>

<mosaic_0001>
module attributes {stable_mosaic.version = 11 : i64} {
  func.func @_duc_fused_kernel(%arg0: memref<128x256xbf16, #tpu.memory_space<vmem>>, %arg1: memref<256x256xbf16, #tpu.memory_space<vmem>>, %arg2: memref<1x256xf32, #tpu.memory_space<vmem>>, %arg3: memref<8x128xf32, #tpu.memory_space<vmem>>, %arg4: memref<256x128xf32, #tpu.memory_space<vmem>>, %arg5: memref<1x128xf32, #tpu.memory_space<vmem>>, %arg6: memref<128x128xf32, #tpu.memory_space<vmem>>, %arg7: memref<1x128xf32, #tpu.memory_space<vmem>>, %arg8: memref<128x256xf32, #tpu.memory_space<vmem>>, %arg9: memref<1x256xf32, #tpu.memory_space<vmem>>, %arg10: memref<128x8xf32, #tpu.memory_space<vmem>>, %arg11: memref<256x1024xbf16, #tpu.memory_space<vmem>>, %arg12: memref<1x1024xf32, #tpu.memory_space<vmem>>, %arg13: memref<128x1024xf32, #tpu.memory_space<vmem>>) attributes {dimension_semantics = [], scalar_prefetch = 0 : i64, scratch_operands = 0 : i64, tpu.core_type = #tpu.core_type<tc>} {
    %c0 = arith.constant 0 : index
    %c0_0 = arith.constant 0 : index
    %0 = vector.load %arg0[%c0, %c0_0] : memref<128x256xbf16, #tpu.memory_space<vmem>>, vector<128x256xbf16>
    %c0_1 = arith.constant 0 : index
    %c0_2 = arith.constant 0 : index
    %1 = vector.load %arg1[%c0_1, %c0_2] : memref<256x256xbf16, #tpu.memory_space<vmem>>, vector<256x256xbf16>
    %cst = arith.constant dense<0.000000e+00> : vector<128x256xf32>
    %2 = tpu.matmul %0, %1, %cst {dimension_numbers = #tpu.dot_dimension_numbers<[1], [0], [0], [1], [0, 0, 1, 1], [], []>} : vector<128x256xbf16>, vector<256x256xbf16>, vector<128x256xf32> -> vector<128x256xf32>
    %c0_3 = arith.constant 0 : index
    %c0_4 = arith.constant 0 : index
    %3 = vector.load %arg2[%c0_3, %c0_4] : memref<1x256xf32, #tpu.memory_space<vmem>>, vector<1x256xf32>
    %4 = vector.broadcast %3 : vector<1x256xf32> to vector<128x256xf32>
    %5 = arith.addf %2, %4 : vector<128x256xf32>
    %c0_5 = arith.constant 0 : index
    %c0_6 = arith.constant 0 : index
    %6 = vector.load %arg3[%c0_5, %c0_6] : memref<8x128xf32, #tpu.memory_space<vmem>>, vector<8x128xf32>
    %cst_7 = arith.constant dense<0.000000e+00> : vector<8x256xf32>
    %7 = tpu.matmul %6, %5, %cst_7 {dimension_numbers = #tpu.dot_dimension_numbers<[1], [0], [0], [1], [0, 0, 1, 1], [], []>} : vector<8x128xf32>, vector<128x256xf32>, vector<8x256xf32> -> vector<8x256xf32>
    %c0_8 = arith.constant 0 : index
    %c0_9 = arith.constant 0 : index
    %8 = vector.load %arg4[%c0_8, %c0_9] : memref<256x128xf32, #tpu.memory_space<vmem>>, vector<256x128xf32>
    %cst_10 = arith.constant dense<0.000000e+00> : vector<8x128xf32>
    %9 = tpu.matmul %7, %8, %cst_10 {dimension_numbers = #tpu.dot_dimension_numbers<[1], [0], [0], [1], [0, 0, 1, 1], [], []>} : vector<8x256xf32>, vector<256x128xf32>, vector<8x128xf32> -> vector<8x128xf32>
    %c0_11 = arith.constant 0 : index
    %c0_12 = arith.constant 0 : index
    %10 = vector.load %arg5[%c0_11, %c0_12] : memref<1x128xf32, #tpu.memory_space<vmem>>, vector<1x128xf32>
    %11 = vector.broadcast %10 : vector<1x128xf32> to vector<8x128xf32>
    %12 = arith.addf %9, %11 : vector<8x128xf32>
    %c0_13 = arith.constant 0 : index
    %c0_14 = arith.constant 0 : index
    %13 = vector.load %arg6[%c0_13, %c0_14] : memref<128x128xf32, #tpu.memory_space<vmem>>, vector<128x128xf32>
    %cst_15 = arith.constant dense<0.000000e+00> : vector<8x128xf32>
    %14 = tpu.matmul %12, %13, %cst_15 {dimension_numbers = #tpu.dot_dimension_numbers<[1], [0], [0], [1], [0, 0, 1, 1], [], []>} : vector<8x128xf32>, vector<128x128xf32>, vector<8x128xf32> -> vector<8x128xf32>
    %c0_16 = arith.constant 0 : index
    %c0_17 = arith.constant 0 : index
    %15 = vector.load %arg7[%c0_16, %c0_17] : memref<1x128xf32, #tpu.memory_space<vmem>>, vector<1x128xf32>
    %16 = vector.broadcast %15 : vector<1x128xf32> to vector<8x128xf32>
    %17 = arith.addf %14, %16 : vector<8x128xf32>
    %cst_18 = arith.constant 0.000000e+00 : f32
    %18 = vector.broadcast %cst_18 : f32 to vector<8x128xf32>
    %19 = arith.maximumf %17, %18 : vector<8x128xf32>
    %c0_19 = arith.constant 0 : index
    %c0_20 = arith.constant 0 : index
    %20 = vector.load %arg8[%c0_19, %c0_20] : memref<128x256xf32, #tpu.memory_space<vmem>>, vector<128x256xf32>
    %cst_21 = arith.constant dense<0.000000e+00> : vector<8x256xf32>
    %21 = tpu.matmul %19, %20, %cst_21 {dimension_numbers = #tpu.dot_dimension_numbers<[1], [0], [0], [1], [0, 0, 1, 1], [], []>} : vector<8x128xf32>, vector<128x256xf32>, vector<8x256xf32> -> vector<8x256xf32>
    %c0_22 = arith.constant 0 : index
    %c0_23 = arith.constant 0 : index
    %22 = vector.load %arg9[%c0_22, %c0_23] : memref<1x256xf32, #tpu.memory_space<vmem>>, vector<1x256xf32>
    %23 = vector.broadcast %22 : vector<1x256xf32> to vector<8x256xf32>
    %24 = arith.addf %21, %23 : vector<8x256xf32>
    %c0_24 = arith.constant 0 : index
    %c0_25 = arith.constant 0 : index
    %25 = vector.load %arg10[%c0_24, %c0_25] : memref<128x8xf32, #tpu.memory_space<vmem>>, vector<128x8xf32>
    %cst_26 = arith.constant dense<0.000000e+00> : vector<128x256xf32>
    %26 = tpu.matmul %25, %24, %cst_26 {dimension_numbers = #tpu.dot_dimension_numbers<[1], [0], [0], [1], [0, 0, 1, 1], [], []>} : vector<128x8xf32>, vector<8x256xf32>, vector<128x256xf32> -> vector<128x256xf32>
    %27 = arith.mulf %5, %26 : vector<128x256xf32>
    %28 = arith.truncf %27 : vector<128x256xf32> to vector<128x256xbf16>
    %c0_27 = arith.constant 0 : index
    %c0_28 = arith.constant 0 : index
    %29 = vector.load %arg11[%c0_27, %c0_28] : memref<256x1024xbf16, #tpu.memory_space<vmem>>, vector<256x1024xbf16>
    %cst_29 = arith.constant dense<0.000000e+00> : vector<128x1024xf32>
    %30 = tpu.matmul %28, %29, %cst_29 {dimension_numbers = #tpu.dot_dimension_numbers<[1], [0], [0], [1], [0, 0, 1, 1], [], []>} : vector<128x256xbf16>, vector<256x1024xbf16>, vector<128x1024xf32> -> vector<128x1024xf32>
    %c0_30 = arith.constant 0 : index
    %c0_31 = arith.constant 0 : index
    %31 = vector.load %arg12[%c0_30, %c0_31] : memref<1x1024xf32, #tpu.memory_space<vmem>>, vector<1x1024xf32>
    %32 = vector.broadcast %31 : vector<1x1024xf32> to vector<128x1024xf32>
    %33 = arith.addf %30, %32 : vector<128x1024xf32>
    %c0_32 = arith.constant 0 : index
    %c0_33 = arith.constant 0 : index
    %34 = vector.load %arg13[%c0_32, %c0_33] : memref<128x1024xf32, #tpu.memory_space<vmem>>, vector<128x1024xf32>
    tpu.vector_store %arg13[%c0_32, %c0_33], %33 {strides = array<i32>} : memref<128x1024xf32, #tpu.memory_space<vmem>>, vector<128x1024xf32>,
    return
  }
}

</mosaic_0001>

<llo_original>
// kernel: duc_forward.1
$region0: #{duc_forward.1}
  #allocation0 [shape = 'u32[]', space=smem, size = 0x4, offset = 0x4, fixed_abs, tag = 'smem constant byte address 0x4 - core index']
  #allocation1 [shape = 'u32[144,128]{1,0:T(1,128)}', space=vmem, size = 0x12000, scoped, tag = 'internal scratch']
  %s0 = inlined_call_operand.vmem [shape: bf16[128,256], index: 0, kind: input, shape index: {}]
  %s1 = inlined_call_operand.vmem [shape: bf16[256,256], index: 1, kind: input, shape index: {}]
  %s2 = inlined_call_operand.vmem [shape: f32[1,256], index: 2, kind: input, shape index: {}]
  %s3 = inlined_call_operand.vmem [shape: f32[8,128], index: 3, kind: input, shape index: {}]
  %s4 = inlined_call_operand.vmem [shape: f32[256,128], index: 4, kind: input, shape index: {}]
  %s5 = inlined_call_operand.vmem [shape: f32[1,128], index: 5, kind: input, shape index: {}]
  %s6 = inlined_call_operand.hbm [shape: f32[128,128], index: 6, kind: input, shape index: {}]
  %s7 = inlined_call_operand.vmem [shape: f32[1,128], index: 7, kind: input, shape index: {}]
  %s8 = inlined_call_operand.hbm [shape: f32[128,256], index: 8, kind: input, shape index: {}]
  %s9 = inlined_call_operand.vmem [shape: f32[1,256], index: 9, kind: input, shape index: {}]
  %s10 = inlined_call_operand.vmem [shape: f32[128,8], index: 10, kind: input, shape index: {}]
  %s11 = inlined_call_operand.hbm [shape: bf16[256,1024], index: 11, kind: input, shape index: {}]
  %s12 = inlined_call_operand.vmem [shape: f32[1,1024], index: 12, kind: input, shape index: {}]
  %s13 = inlined_call_operand.vmem [shape: f32[128,1024], index: 13, kind: output, shape index: {}]
  %s14 = sld [smem:[#allocation0]]
  $region74: #{duc_forward.1} parent=0
    _
  %s16 = ssub.s32 1, %s14
  %s17 = scalar_select 0, %s16, %s14
  $region1: #{duc_forward.1} parent=0
    #allocation2 [shape = 'u8[65536]{0}', space=vmem, size = 0x10000, scoped, tag = 'input window, operand 6, single buffered']
    #allocation3 [shape = 's32[1]{0}', space=sflag, size = 0x4, scoped, tag = 'scoped memory for duc_forward.1']
    #allocation4 [shape = 'u8[131072]{0}', space=vmem, size = 0x20000, scoped, tag = 'input window, operand 8, single buffered']
    #allocation5 [shape = 's32[1]{0}', space=sflag, size = 0x4, scoped, tag = 'scoped memory for duc_forward.1']
    #allocation6 [shape = 'u8[524288]{0}', space=vmem, size = 0x80000, scoped, tag = 'input window, operand 11, single buffered']
    %18 = vsyncpa [#allocation3], 0
    %19 = vsyncpa [#allocation5], 0
    // Predicated region
    $region2: #{duc_forward.1} parent=1 // pred_check
      _
    $region3: #{duc_forward.1} parent=1 // pred_check_branch
      %21 = sbr.rel (0) target = $region5
    $region4: #{duc_forward.1} parent=1 // pred_region
      _
    $region5: #{duc_forward.1} parent=1 // pred_fallthru
      _
    // Predicated region
    $region6: #{duc_forward.1} parent=1 // pred_check
      _
    $region7: #{duc_forward.1} parent=1 // pred_check_branch
      %23 = sbr.rel (0) target = $region9
    $region8: #{duc_forward.1} parent=1 // pred_region
      _
    $region9: #{duc_forward.1} parent=1 // pred_fallthru
      _
    // Predicated region
    $region10: #{duc_forward.1} parent=1 // pred_check
      _
    $region11: #{duc_forward.1} parent=1 // pred_check_branch
      %25 = sbr.rel (0) target = $region13
    $region12: #{duc_forward.1} parent=1 // pred_region
      _
    $region13: #{duc_forward.1} parent=1 // pred_fallthru
      _
    // Predicated region
    $region14: #{duc_forward.1} parent=1 // pred_check
      _
    $region15: #{duc_forward.1} parent=1 // pred_check_branch
      %27 = sbr.rel (0) target = $region17
    $region16: #{duc_forward.1} parent=1 // pred_region
      _
    $region17: #{duc_forward.1} parent=1 // pred_fallthru
      _
    // Predicated region
    $region18: #{duc_forward.1} parent=1 // pred_check
      _
    $region19: #{duc_forward.1} parent=1 // pred_check_branch
      %29 = sbr.rel (0) target = $region21
    $region20: #{duc_forward.1} parent=1 // pred_region
      _
    $region21: #{duc_forward.1} parent=1 // pred_fallthru
      _
    // Predicated region
    $region22: #{duc_forward.1} parent=1 // pred_check
      _
    $region23: #{duc_forward.1} parent=1 // pred_check_branch
      %31 = sbr.rel (0) target = $region25
    $region24: #{duc_forward.1} parent=1 // pred_region
      _
    $region25: #{duc_forward.1} parent=1 // pred_fallthru
      _
    // Predicated region
    $region26: #{duc_forward.1} parent=1 // pred_check
      _
    $region27: #{duc_forward.1} parent=1 // pred_check_branch
      %33 = sbr.rel (0) target = $region29
    $region28: #{duc_forward.1} parent=1 // pred_region
      %s35 = ssub.s32 2048, 2048
      %36 = vsyncadd [#allocation3], %s35
      %s37 = sshll.u32 [#allocation2], 4
      %s38 = int_to_ptr.vmem [resolvable:$true] %s37
      %43 = dma.hbm_to_vmem [thread:$0]  %s6, 2048, %s38, [#allocation3], 128, 128, 8
    $region29: #{duc_forward.1} parent=1 // pred_fallthru
      _
    // Predicated region
    $region30: #{duc_forward.1} parent=1 // pred_check
      _
    $region31: #{duc_forward.1} parent=1 // pred_check_branch
      %45 = sbr.rel (0) target = $region33
    $region32: #{duc_forward.1} parent=1 // pred_region
      _
    $region33: #{duc_forward.1} parent=1 // pred_fallthru
      _
    // Predicated region
    $region34: #{duc_forward.1} parent=1 // pred_check
      _
    $region35: #{duc_forward.1} parent=1 // pred_check_branch
      %47 = sbr.rel (0) target = $region37
    $region36: #{duc_forward.1} parent=1 // pred_region
      %s49 = ssub.s32 4096, 4096
      %50 = vsyncadd [#allocation5], %s49
      %s51 = sshll.u32 [#allocation4], 4
      %s52 = int_to_ptr.vmem [resolvable:$true] %s51
      %57 = dma.hbm_to_vmem [thread:$0]  %s8, 4096, %s52, [#allocation5], 256, 256, 16
    $region37: #{duc_forward.1} parent=1 // pred_fallthru
      _
    // Predicated region
    $region38: #{duc_forward.1} parent=1 // pred_check
      _
    $region39: #{duc_forward.1} parent=1 // pred_check_branch
      %59 = sbr.rel (0) target = $region41
    $region40: #{duc_forward.1} parent=1 // pred_region
      _
    $region41: #{duc_forward.1} parent=1 // pred_fallthru
      _
    // Predicated region
    $region42: #{duc_forward.1} parent=1 // pred_check
      _
    $region43: #{duc_forward.1} parent=1 // pred_check_branch
      %61 = sbr.rel (0) target = $region45
    $region44: #{duc_forward.1} parent=1 // pred_region
      _
    $region45: #{duc_forward.1} parent=1 // pred_fallthru
      _
    // Predicated region
    $region46: #{duc_forward.1} parent=1 // pred_check
      _
    $region47: #{duc_forward.1} parent=1 // pred_check_branch
      %63 = sbr.rel (0) target = $region49
    $region48: #{duc_forward.1} parent=1 // pred_region
      %s65 = ssub.s32 16384, 16384
      %66 = vsyncadd [#allocation5], %s65
      %s67 = sshll.u32 [#allocation6], 4
      %s68 = int_to_ptr.vmem [resolvable:$true] %s67
      %73 = dma.hbm_to_vmem [thread:$0]  %s11, 16384, %s68, [#allocation5], 512, 512, 32
    $region49: #{duc_forward.1} parent=1 // pred_fallthru
      _
    // Predicated region
    $region50: #{duc_forward.1} parent=1 // pred_check
      _
    $region51: #{duc_forward.1} parent=1 // pred_check_branch
      %75 = sbr.rel (0) target = $region53
    $region52: #{duc_forward.1} parent=1 // pred_region
      _
    $region53: #{duc_forward.1} parent=1 // pred_fallthru
      _
    // Predicated region
    $region54: #{duc_forward.1} parent=1 // pred_check
      _
    $region55: #{duc_forward.1} parent=1 // pred_check_branch
      %77 = sbr.rel (0) target = $region57
    $region56: #{duc_forward.1} parent=1 // pred_region
      %78 = dma.done [#allocation3], 2048
    $region57: #{duc_forward.1} parent=1 // pred_fallthru
      _
    // Predicated region
    $region58: #{duc_forward.1} parent=1 // pred_check
      _
    $region59: #{duc_forward.1} parent=1 // pred_check_branch
      %80 = sbr.rel (0) target = $region61
    $region60: #{duc_forward.1} parent=1 // pred_region
      %81 = dma.done [#allocation5], 4096
    $region61: #{duc_forward.1} parent=1 // pred_fallthru
      _
    // Predicated region
    $region62: #{duc_forward.1} parent=1 // pred_check
      _
    $region63: #{duc_forward.1} parent=1 // pred_check_branch
      %83 = sbr.rel (0) target = $region65
    $region64: #{duc_forward.1} parent=1 // pred_region
      %84 = dma.done [#allocation5], 16384
    $region65: #{duc_forward.1} parent=1 // pred_fallthru
      _
    %v85 = vld [vmem:[%s0] sm:$0xff]
    %v86 = vld [vmem:[%s0 + $0x8] sm:$0xff]
    %v87 = vld [vmem:[%s0 + $0x10] sm:$0xff]
    %v88 = vld [vmem:[%s0 + $0x18] sm:$0xff]
    %v89 = vld [vmem:[%s0 + $0x20] sm:$0xff]
    %v90 = vld [vmem:[%s0 + $0x28] sm:$0xff]
    %v91 = vld [vmem:[%s0 + $0x30] sm:$0xff]
    %v92 = vld [vmem:[%s0 + $0x38] sm:$0xff]
    %v93 = vld [vmem:[%s0 + $0x40] sm:$0xff]
    %v94 = vld [vmem:[%s0 + $0x48] sm:$0xff]
    %v95 = vld [vmem:[%s0 + $0x50] sm:$0xff]
    %v96 = vld [vmem:[%s0 + $0x58] sm:$0xff]
    %v97 = vld [vmem:[%s0 + $0x60] sm:$0xff]
    %v98 = vld [vmem:[%s0 + $0x68] sm:$0xff]
    %v99 = vld [vmem:[%s0 + $0x70] sm:$0xff]
    %v100 = vld [vmem:[%s0 + $0x78] sm:$0xff]
    %v101 = vld [vmem:[%s1] sm:$0xff]
    %v102 = vld [vmem:[%s1 + $0x8] sm:$0xff]
    %v103 = vld [vmem:[%s1 + $0x10] sm:$0xff]
    %v104 = vld [vmem:[%s1 + $0x18] sm:$0xff]
    %v105 = vld [vmem:[%s1 + $0x20] sm:$0xff]
    %v106 = vld [vmem:[%s1 + $0x28] sm:$0xff]
    %v107 = vld [vmem:[%s1 + $0x30] sm:$0xff]
    %v108 = vld [vmem:[%s1 + $0x38] sm:$0xff]
    %v109 = vld [vmem:[%s1 + $0x40] sm:$0xff]
    %v110 = vld [vmem:[%s1 + $0x48] sm:$0xff]
    %v111 = vld [vmem:[%s1 + $0x50] sm:$0xff]
    %v112 = vld [vmem:[%s1 + $0x58] sm:$0xff]
    %v113 = vld [vmem:[%s1 + $0x60] sm:$0xff]
    %v114 = vld [vmem:[%s1 + $0x68] sm:$0xff]
    %v115 = vld [vmem:[%s1 + $0x70] sm:$0xff]
    %v116 = vld [vmem:[%s1 + $0x78] sm:$0xff]
    %v117 = vld [vmem:[%s1 + $0x80] sm:$0xff]
    %v118 = vld [vmem:[%s1 + $0x88] sm:$0xff]
    %v119 = vld [vmem:[%s1 + $0x90] sm:$0xff]
    %v120 = vld [vmem:[%s1 + $0x98] sm:$0xff]
    %v121 = vld [vmem:[%s1 + $0xa0] sm:$0xff]
    %v122 = vld [vmem:[%s1 + $0xa8] sm:$0xff]
    %v123 = vld [vmem:[%s1 + $0xb0] sm:$0xff]
    %v124 = vld [vmem:[%s1 + $0xb8] sm:$0xff]
    %v125 = vld [vmem:[%s1 + $0xc0] sm:$0xff]
    %v126 = vld [vmem:[%s1 + $0xc8] sm:$0xff]
    %v127 = vld [vmem:[%s1 + $0xd0] sm:$0xff]
    %v128 = vld [vmem:[%s1 + $0xd8] sm:$0xff]
    %v129 = vld [vmem:[%s1 + $0xe0] sm:$0xff]
    %v130 = vld [vmem:[%s1 + $0xe8] sm:$0xff]
    %v131 = vld [vmem:[%s1 + $0xf0] sm:$0xff]
    %v132 = vld [vmem:[%s1 + $0xf8] sm:$0xff]
    %v133 = vld [vmem:[%s2] sm:$0x3]
    %v135 = vlaneseq
    %v136 = vshrl.u32 %v135, 7
    %v137 = vsub.s32 0, %v136
    %v138 = vrot.slane %v133, %v137
    %v139 = vlaneseq
    %v140 = vshrl.u32 %v139, 7
    %v141 = vsub.s32 1, %v140
    %v142 = vrot.slane %v133, %v141
    %v161 = vunpack.c.l.b16 %v85
    %v162 = vunpack.c.h.b16 %v85
    %v163 = vunpack.c.l.b16 %v86
    %v164 = vunpack.c.h.b16 %v86
    %v165 = vunpack.c.l.b16 %v87
    %v166 = vunpack.c.h.b16 %v87
    %v167 = vunpack.c.l.b16 %v88
    %v168 = vunpack.c.h.b16 %v88
    %v169 = vunpack.c.l.b16 %v89
    %v170 = vunpack.c.h.b16 %v89
    %v171 = vunpack.c.l.b16 %v90
    %v172 = vunpack.c.h.b16 %v90
    %v173 = vunpack.c.l.b16 %v91
    %v174 = vunpack.c.h.b16 %v91
    %v175 = vunpack.c.l.b16 %v92
    %v176 = vunpack.c.h.b16 %v92
    %v177 = vunpack.c.l.b16 %v93
    %v178 = vunpack.c.h.b16 %v93
    %v179 = vunpack.c.l.b16 %v94
    %v180 = vunpack.c.h.b16 %v94
    %v181 = vunpack.c.l.b16 %v95
    %v182 = vunpack.c.h.b16 %v95
    %v183 = vunpack.c.l.b16 %v96
    %v184 = vunpack.c.h.b16 %v96
    %v185 = vunpack.c.l.b16 %v97
    %v186 = vunpack.c.h.b16 %v97
    %v187 = vunpack.c.l.b16 %v98
    %v188 = vunpack.c.h.b16 %v98
    %v189 = vunpack.c.l.b16 %v99
    %v190 = vunpack.c.h.b16 %v99
    %v191 = vunpack.c.l.b16 %v100
    %v192 = vunpack.c.h.b16 %v100
    %v193 = vpack.c.b16 %v163, %v161
    %v194 = vpack.c.b16 %v164, %v162
    %v195 = vpack.c.b16 %v167, %v165
    %v196 = vpack.c.b16 %v168, %v166
    %v197 = vpack.c.b16 %v171, %v169
    %v198 = vpack.c.b16 %v172, %v170
    %v199 = vpack.c.b16 %v175, %v173
    %v200 = vpack.c.b16 %v176, %v174
    %v201 = vpack.c.b16 %v179, %v177
    %v202 = vpack.c.b16 %v180, %v178
    %v203 = vpack.c.b16 %v183, %v181
    %v204 = vpack.c.b16 %v184, %v182
    %v205 = vpack.c.b16 %v187, %v185
    %v206 = vpack.c.b16 %v188, %v186
    %v207 = vpack.c.b16 %v191, %v189
    %v208 = vpack.c.b16 %v192, %v190
    %v257 = vunpack.c.l.b16 %v101
    %v258 = vunpack.c.h.b16 %v101
    %v259 = vunpack.c.l.b16 %v102
    %v260 = vunpack.c.h.b16 %v102
    %v261 = vunpack.c.l.b16 %v103
    %v262 = vunpack.c.h.b16 %v103
    %v263 = vunpack.c.l.b16 %v104
    %v264 = vunpack.c.h.b16 %v104
    %v265 = vunpack.c.l.b16 %v105
    %v266 = vunpack.c.h.b16 %v105
    %v267 = vunpack.c.l.b16 %v106
    %v268 = vunpack.c.h.b16 %v106
    %v269 = vunpack.c.l.b16 %v107
    %v270 = vunpack.c.h.b16 %v107
    %v271 = vunpack.c.l.b16 %v108
    %v272 = vunpack.c.h.b16 %v108
    %v273 = vunpack.c.l.b16 %v109
    %v274 = vunpack.c.h.b16 %v109
    %v275 = vunpack.c.l.b16 %v110
    %v276 = vunpack.c.h.b16 %v110
    %v277 = vunpack.c.l.b16 %v111
    %v278 = vunpack.c.h.b16 %v111
    %v279 = vunpack.c.l.b16 %v112
    %v280 = vunpack.c.h.b16 %v112
    %v281 = vunpack.c.l.b16 %v113
    %v282 = vunpack.c.h.b16 %v113
    %v283 = vunpack.c.l.b16 %v114
    %v284 = vunpack.c.h.b16 %v114
    %v285 = vunpack.c.l.b16 %v115
    %v286 = vunpack.c.h.b16 %v115
    %v287 = vunpack.c.l.b16 %v116
    %v288 = vunpack.c.h.b16 %v116
    %v289 = vunpack.c.l.b16 %v117
    %v290 = vunpack.c.h.b16 %v117
    %v291 = vunpack.c.l.b16 %v118
    %v292 = vunpack.c.h.b16 %v118
    %v293 = vunpack.c.l.b16 %v119
    %v294 = vunpack.c.h.b16 %v119
    %v295 = vunpack.c.l.b16 %v120
    %v296 = vunpack.c.h.b16 %v120
    %v297 = vunpack.c.l.b16 %v121
    %v298 = vunpack.c.h.b16 %v121
    %v299 = vunpack.c.l.b16 %v122
    %v300 = vunpack.c.h.b16 %v122
    %v301 = vunpack.c.l.b16 %v123
    %v302 = vunpack.c.h.b16 %v123
    %v303 = vunpack.c.l.b16 %v124
    %v304 = vunpack.c.h.b16 %v124
    %v305 = vunpack.c.l.b16 %v125
    %v306 = vunpack.c.h.b16 %v125
    %v307 = vunpack.c.l.b16 %v126
    %v308 = vunpack.c.h.b16 %v126
    %v309 = vunpack.c.l.b16 %v127
    %v310 = vunpack.c.h.b16 %v127
    %v311 = vunpack.c.l.b16 %v128
    %v312 = vunpack.c.h.b16 %v128
    %v313 = vunpack.c.l.b16 %v129
    %v314 = vunpack.c.h.b16 %v129
    %v315 = vunpack.c.l.b16 %v130
    %v316 = vunpack.c.h.b16 %v130
    %v317 = vunpack.c.l.b16 %v131
    %v318 = vunpack.c.h.b16 %v131
    %v319 = vunpack.c.l.b16 %v132
    %v320 = vunpack.c.h.b16 %v132
    %v321 = vpack.c.b16 %v259, %v257
    %v322 = vpack.c.b16 %v260, %v258
    %v323 = vpack.c.b16 %v263, %v261
    %v324 = vpack.c.b16 %v264, %v262
    %v325 = vpack.c.b16 %v267, %v265
    %v326 = vpack.c.b16 %v268, %v266
    %v327 = vpack.c.b16 %v271, %v269
    %v328 = vpack.c.b16 %v272, %v270
    %v329 = vpack.c.b16 %v275, %v273
    %v330 = vpack.c.b16 %v276, %v274
    %v331 = vpack.c.b16 %v279, %v277
    %v332 = vpack.c.b16 %v280, %v278
    %v333 = vpack.c.b16 %v283, %v281
    %v334 = vpack.c.b16 %v284, %v282
    %v335 = vpack.c.b16 %v287, %v285
    %v336 = vpack.c.b16 %v288, %v286
    %v337 = vpack.c.b16 %v291, %v289
    %v338 = vpack.c.b16 %v292, %v290
    %v339 = vpack.c.b16 %v295, %v293
    %v340 = vpack.c.b16 %v296, %v294
    %v341 = vpack.c.b16 %v299, %v297
    %v342 = vpack.c.b16 %v300, %v298
    %v343 = vpack.c.b16 %v303, %v301
    %v344 = vpack.c.b16 %v304, %v302
    %v345 = vpack.c.b16 %v307, %v305
    %v346 = vpack.c.b16 %v308, %v306
    %v347 = vpack.c.b16 %v311, %v309
    %v348 = vpack.c.b16 %v312, %v310
    %v349 = vpack.c.b16 %v315, %v313
    %v350 = vpack.c.b16 %v316, %v314
    %v351 = vpack.c.b16 %v319, %v317
    %v352 = vpack.c.b16 %v320, %v318
    %385 = vmatprep.subr.bf16.mxu0 %v322
    %386 = vmatpush1.bf16.msra.mxu0 %v321
    %387 = vmatprep.subr.bf16.mxu0 %v324
    %388 = vmatpush1.bf16.msra.mxu0 %v323
    %389 = vmatprep.subr.bf16.mxu0 %v326
    %390 = vmatpush1.bf16.msra.mxu0 %v325
    %391 = vmatprep.subr.bf16.mxu0 %v328
    %392 = vmatpush1.bf16.msra.mxu0 %v327
    %393 = vmatprep.subr.bf16.mxu0 %v330
    %394 = vmatpush1.bf16.msra.mxu0 %v329
    %395 = vmatprep.subr.bf16.mxu0 %v332
    %396 = vmatpush1.bf16.msra.mxu0 %v331
    %397 = vmatprep.subr.bf16.mxu0 %v334
    %398 = vmatpush1.bf16.msra.mxu0 %v333
    %399 = vmatprep.subr.bf16.mxu0 %v336
    %400 = vmatpush1.bf16.msra.mxu0 %v335
    %401 = vmatprep.subr.bf16.mxu0 %v338
    %402 = vmatpush1.bf16.msra.mxu0 %v337
    %403 = vmatprep.subr.bf16.mxu0 %v340
    %404 = vmatpush1.bf16.msra.mxu0 %v339
    %405 = vmatprep.subr.bf16.mxu0 %v342
    %406 = vmatpush1.bf16.msra.mxu0 %v341
    %407 = vmatprep.subr.bf16.mxu0 %v344
    %408 = vmatpush1.bf16.msra.mxu0 %v343
    %409 = vmatprep.subr.bf16.mxu0 %v346
    %410 = vmatpush1.bf16.msra.mxu0 %v345
    %411 = vmatprep.subr.bf16.mxu0 %v348
    %412 = vmatpush1.bf16.msra.mxu0 %v347
    %413 = vmatprep.subr.bf16.mxu0 %v350
    %414 = vmatpush1.bf16.msra.mxu0 %v349
    %415 = vmatprep.subr.bf16.mxu0 %v352
    %416 = vmatpush1.bf16.msra.mxu0 %v351
    %417 = vmatprep.mubr.bf16.mxu0 %v194
    %418 = vmatmul.mubr.bf16.gmra.mrb[0].mxu0 %v193
    %v419 = vpop.f32.mrb[0].mxu0
    %v420 = vadd.f32 %v138, %v419
    %v421 = vpop.f32.mrb[0].mxu0
    %v422 = vadd.f32 %v142, %v421
    %v423 = vpop.f32.mrb[0].mxu0
    %v424 = vadd.f32 %v138, %v423
    %v425 = vpop.f32.mrb[0].mxu0
    %v426 = vadd.f32 %v142, %v425
    %427 = vmatprep.mubr.bf16.mxu0 %v196
    %428 = vmatmul.mubr.bf16.gmra.mrb[0].mxu0 %v195
    %v429 = vpop.f32.mrb[0].mxu0
    %v430 = vadd.f32 %v138, %v429
    %v431 = vpop.f32.mrb[0].mxu0
    %v432 = vadd.f32 %v142, %v431
    %v433 = vpop.f32.mrb[0].mxu0
    %v434 = vadd.f32 %v138, %v433
    %v435 = vpop.f32.mrb[0].mxu0
    %v436 = vadd.f32 %v142, %v435
    %437 = vmatprep.mubr.bf16.mxu0 %v198
    %438 = vmatmul.mubr.bf16.gmra.mrb[0].mxu0 %v197
    %v439 = vpop.f32.mrb[0].mxu0
    %v440 = vadd.f32 %v138, %v439
    %v441 = vpop.f32.mrb[0].mxu0
    %v442 = vadd.f32 %v142, %v441
    %v443 = vpop.f32.mrb[0].mxu0
    %v444 = vadd.f32 %v138, %v443
    %v445 = vpop.f32.mrb[0].mxu0
    %v446 = vadd.f32 %v142, %v445
    %447 = vmatprep.mubr.bf16.mxu0 %v200
    %448 = vmatmul.mubr.bf16.gmra.mrb[0].mxu0 %v199
    %v449 = vpop.f32.mrb[0].mxu0
    %v450 = vadd.f32 %v138, %v449
    %v451 = vpop.f32.mrb[0].mxu0
    %v452 = vadd.f32 %v142, %v451
    %v453 = vpop.f32.mrb[0].mxu0
    %v454 = vadd.f32 %v138, %v453
    %v455 = vpop.f32.mrb[0].mxu0
    %v456 = vadd.f32 %v142, %v455
    %457 = vmatprep.mubr.bf16.mxu0 %v202
    %458 = vmatmul.mubr.bf16.gmra.mrb[0].mxu0 %v201
    %v459 = vpop.f32.mrb[0].mxu0
    %v460 = vadd.f32 %v138, %v459
    %v461 = vpop.f32.mrb[0].mxu0
    %v462 = vadd.f32 %v142, %v461
    %v463 = vpop.f32.mrb[0].mxu0
    %v464 = vadd.f32 %v138, %v463
    %v465 = vpop.f32.mrb[0].mxu0
    %v466 = vadd.f32 %v142, %v465
    %467 = vmatprep.mubr.bf16.mxu0 %v204
    %468 = vmatmul.mubr.bf16.gmra.mrb[0].mxu0 %v203
    %v469 = vpop.f32.mrb[0].mxu0
    %v470 = vadd.f32 %v138, %v469
    %v471 = vpop.f32.mrb[0].mxu0
    %v472 = vadd.f32 %v142, %v471
    %v473 = vpop.f32.mrb[0].mxu0
    %v474 = vadd.f32 %v138, %v473
    %v475 = vpop.f32.mrb[0].mxu0
    %v476 = vadd.f32 %v142, %v475
    %477 = vmatprep.mubr.bf16.mxu0 %v206
    %478 = vmatmul.mubr.bf16.gmra.mrb[0].mxu0 %v205
    %v479 = vpop.f32.mrb[0].mxu0
    %v480 = vadd.f32 %v138, %v479
    %v481 = vpop.f32.mrb[0].mxu0
    %v482 = vadd.f32 %v142, %v481
    %v483 = vpop.f32.mrb[0].mxu0
    %v484 = vadd.f32 %v138, %v483
    %v485 = vpop.f32.mrb[0].mxu0
    %v486 = vadd.f32 %v142, %v485
    %487 = vmatprep.mubr.bf16.mxu0 %v208
    %488 = vmatmul.mubr.bf16.gmra.mrb[0].mxu0 %v207
    %v489 = vpop.f32.mrb[0].mxu0
    %v490 = vadd.f32 %v138, %v489
    %v491 = vpop.f32.mrb[0].mxu0
    %v492 = vadd.f32 %v142, %v491
    %v493 = vpop.f32.mrb[0].mxu0
    %v494 = vadd.f32 %v138, %v493
    %v495 = vpop.f32.mrb[0].mxu0
    %v496 = vadd.f32 %v142, %v495
    %497 = vdwg.mxu0
    %v498 = vld [vmem:[%s3] sm:$0xff]
    %499 = vmatprep.subr.mxu0 %v422
    %500 = vmatpush1.msra.mxu0 %v420
    %501 = vmatprep.subr.mxu0 %v426
    %502 = vmatpush1.msra.mxu0 %v424
    %503 = vmatprep.subr.mxu0 %v432
    %504 = vmatpush1.msra.mxu0 %v430
    %505 = vmatprep.subr.mxu0 %v436
    %506 = vmatpush1.msra.mxu0 %v434
    %507 = vmatprep.subr.mxu0 %v442
    %508 = vmatpush1.msra.mxu0 %v440
    %509 = vmatprep.subr.mxu0 %v446
    %510 = vmatpush1.msra.mxu0 %v444
    %511 = vmatprep.subr.mxu0 %v452
    %512 = vmatpush1.msra.mxu0 %v450
    %513 = vmatprep.subr.mxu0 %v456
    %514 = vmatpush1.msra.mxu0 %v454
    %515 = vmatprep.subr.mxu0 %v462
    %516 = vmatpush1.msra.mxu0 %v460
    %517 = vmatprep.subr.mxu0 %v466
    %518 = vmatpush1.msra.mxu0 %v464
    %519 = vmatprep.subr.mxu0 %v472
    %520 = vmatpush1.msra.mxu0 %v470
    %521 = vmatprep.subr.mxu0 %v476
    %522 = vmatpush1.msra.mxu0 %v474
    %523 = vmatprep.subr.mxu0 %v482
    %524 = vmatpush1.msra.mxu0 %v480
    %525 = vmatprep.subr.mxu0 %v486
    %526 = vmatpush1.msra.mxu0 %v484
    %527 = vmatprep.subr.mxu0 %v492
    %528 = vmatpush1.msra.mxu0 %v490
    %529 = vmatprep.subr.mxu0 %v496
    %530 = vmatpush1.msra.mxu0 %v494
    %531 = vmatprep.subr.mxu0 0.0
    %532 = vmatpush1.msra.mxu0 0.0
    %533 = vmatprep.subr.mxu0 0.0
    %534 = vmatpush1.msra.mxu0 0.0
    %535 = vmatprep.subr.mxu0 0.0
    %536 = vmatpush1.msra.mxu0 0.0
    %537 = vmatprep.subr.mxu0 0.0
    %538 = vmatpush1.msra.mxu0 0.0
    %539 = vmatprep.subr.mxu0 0.0
    %540 = vmatpush1.msra.mxu0 0.0
    %541 = vmatprep.subr.mxu0 0.0
    %542 = vmatpush1.msra.mxu0 0.0
    %543 = vmatprep.subr.mxu0 0.0
    %544 = vmatpush1.msra.mxu0 0.0
    %545 = vmatprep.subr.mxu0 0.0
    %546 = vmatpush1.msra.mxu0 0.0
    %547 = vmatprep.subr.mxu0 0.0
    %548 = vmatpush1.msra.mxu0 0.0
    %549 = vmatprep.subr.mxu0 0.0
    %550 = vmatpush1.msra.mxu0 0.0
    %551 = vmatprep.subr.mxu0 0.0
    %552 = vmatpush1.msra.mxu0 0.0
    %553 = vmatprep.subr.mxu0 0.0
    %554 = vmatpush1.msra.mxu0 0.0
    %555 = vmatprep.subr.mxu0 0.0
    %556 = vmatpush1.msra.mxu0 0.0
    %557 = vmatprep.subr.mxu0 0.0
    %558 = vmatpush1.msra.mxu0 0.0
    %559 = vmatprep.subr.mxu0 0.0
    %560 = vmatpush1.msra.mxu0 0.0
    %561 = vmatprep.subr.mxu0 0.0
    %562 = vmatpush1.msra.mxu0 0.0
    %563 = vmatprep.mubr.f32.mxu0 0.0
    %564 = vmatmul.mubr.f32.gmra.mrb[0].mxu0 %v498
    %v565 = vpop.f32.mrb[0].mxu0
    %v566 = vadd.f32 0.0, %v565
    %v567 = vpop.f32.mrb[0].mxu0
    %v568 = vadd.f32 0.0, %v567
    %569 = vdwg.mxu0
    %v570 = vld [vmem:[%s4] sm:$0xff]
    %v571 = vld [vmem:[%s4 + $0x8] sm:$0xff]
    %v572 = vld [vmem:[%s4 + $0x10] sm:$0xff]
    %v573 = vld [vmem:[%s4 + $0x18] sm:$0xff]
    %v574 = vld [vmem:[%s4 + $0x20] sm:$0xff]
    %v575 = vld [vmem:[%s4 + $0x28] sm:$0xff]
    %v576 = vld [vmem:[%s4 + $0x30] sm:$0xff]
    %v577 = vld [vmem:[%s4 + $0x38] sm:$0xff]
    %v578 = vld [vmem:[%s4 + $0x40] sm:$0xff]
    %v579 = vld [vmem:[%s4 + $0x48] sm:$0xff]
    %v580 = vld [vmem:[%s4 + $0x50] sm:$0xff]
    %v581 = vld [vmem:[%s4 + $0x58] sm:$0xff]
    %v582 = vld [vmem:[%s4 + $0x60] sm:$0xff]
    %v583 = vld [vmem:[%s4 + $0x68] sm:$0xff]
    %v584 = vld [vmem:[%s4 + $0x70] sm:$0xff]
    %v585 = vld [vmem:[%s4 + $0x78] sm:$0xff]
    %v586 = vld [vmem:[%s4 + $0x80] sm:$0xff]
    %v587 = vld [vmem:[%s4 + $0x88] sm:$0xff]
    %v588 = vld [vmem:[%s4 + $0x90] sm:$0xff]
    %v589 = vld [vmem:[%s4 + $0x98] sm:$0xff]
    %v590 = vld [vmem:[%s4 + $0xa0] sm:$0xff]
    %v591 = vld [vmem:[%s4 + $0xa8] sm:$0xff]
    %v592 = vld [vmem:[%s4 + $0xb0] sm:$0xff]
    %v593 = vld [vmem:[%s4 + $0xb8] sm:$0xff]
    %v594 = vld [vmem:[%s4 + $0xc0] sm:$0xff]
    %v595 = vld [vmem:[%s4 + $0xc8] sm:$0xff]
    %v596 = vld [vmem:[%s4 + $0xd0] sm:$0xff]
    %v597 = vld [vmem:[%s4 + $0xd8] sm:$0xff]
    %v598 = vld [vmem:[%s4 + $0xe0] sm:$0xff]
    %v599 = vld [vmem:[%s4 + $0xe8] sm:$0xff]
    %v600 = vld [vmem:[%s4 + $0xf0] sm:$0xff]
    %v601 = vld [vmem:[%s4 + $0xf8] sm:$0xff]
    %v602 = vld [vmem:[%s5] sm:$0x1]
    %v604 = vlaneseq
    %v605 = vshrl.u32 %v604, 7
    %v606 = vsub.s32 0, %v605
    %v607 = vrot.slane %v602, %v606
    %609 = vmatprep.subr.mxu0 0.0
    %610 = vmatpush1.msra.mxu0 %v570
    %611 = vmatprep.subr.mxu0 0.0
    %612 = vmatpush1.msra.mxu0 %v571
    %613 = vmatprep.subr.mxu0 0.0
    %614 = vmatpush1.msra.mxu0 %v572
    %615 = vmatprep.subr.mxu0 0.0
    %616 = vmatpush1.msra.mxu0 %v573
    %617 = vmatprep.subr.mxu0 0.0
    %618 = vmatpush1.msra.mxu0 %v574
    %619 = vmatprep.subr.mxu0 0.0
    %620 = vmatpush1.msra.mxu0 %v575
    %621 = vmatprep.subr.mxu0 0.0
    %622 = vmatpush1.msra.mxu0 %v576
    %623 = vmatprep.subr.mxu0 0.0
    %624 = vmatpush1.msra.mxu0 %v577
    %625 = vmatprep.subr.mxu0 0.0
    %626 = vmatpush1.msra.mxu0 %v578
    %627 = vmatprep.subr.mxu0 0.0
    %628 = vmatpush1.msra.mxu0 %v579
    %629 = vmatprep.subr.mxu0 0.0
    %630 = vmatpush1.msra.mxu0 %v580
    %631 = vmatprep.subr.mxu0 0.0
    %632 = vmatpush1.msra.mxu0 %v581
    %633 = vmatprep.subr.mxu0 0.0
    %634 = vmatpush1.msra.mxu0 %v582
    %635 = vmatprep.subr.mxu0 0.0
    %636 = vmatpush1.msra.mxu0 %v583
    %637 = vmatprep.subr.mxu0 0.0
    %638 = vmatpush1.msra.mxu0 %v584
    %639 = vmatprep.subr.mxu0 0.0
    %640 = vmatpush1.msra.mxu0 %v585
    %641 = vmatprep.subr.mxu0 0.0
    %642 = vmatpush1.msra.mxu0 %v586
    %643 = vmatprep.subr.mxu0 0.0
    %644 = vmatpush1.msra.mxu0 %v587
    %645 = vmatprep.subr.mxu0 0.0
    %646 = vmatpush1.msra.mxu0 %v588
    %647 = vmatprep.subr.mxu0 0.0
    %648 = vmatpush1.msra.mxu0 %v589
    %649 = vmatprep.subr.mxu0 0.0
    %650 = vmatpush1.msra.mxu0 %v590
    %651 = vmatprep.subr.mxu0 0.0
    %652 = vmatpush1.msra.mxu0 %v591
    %653 = vmatprep.subr.mxu0 0.0
    %654 = vmatpush1.msra.mxu0 %v592
    %655 = vmatprep.subr.mxu0 0.0
    %656 = vmatpush1.msra.mxu0 %v593
    %657 = vmatprep.subr.mxu0 0.0
    %658 = vmatpush1.msra.mxu0 %v594
    %659 = vmatprep.subr.mxu0 0.0
    %660 = vmatpush1.msra.mxu0 %v595
    %661 = vmatprep.subr.mxu0 0.0
    %662 = vmatpush1.msra.mxu0 %v596
    %663 = vmatprep.subr.mxu0 0.0
    %664 = vmatpush1.msra.mxu0 %v597
    %665 = vmatprep.subr.mxu0 0.0
    %666 = vmatpush1.msra.mxu0 %v598
    %667 = vmatprep.subr.mxu0 0.0
    %668 = vmatpush1.msra.mxu0 %v599
    %669 = vmatprep.subr.mxu0 0.0
    %670 = vmatpush1.msra.mxu0 %v600
    %671 = vmatprep.subr.mxu0 0.0
    %672 = vmatpush1.msra.mxu0 %v601
    %673 = vmatprep.mubr.f32.mxu0 %v568
    %674 = vmatmul.mubr.f32.gmra.mrb[0].mxu0 %v566
    %v675 = vpop.f32.mrb[0].mxu0
    %v676 = vadd.f32 %v607, %v675
    %v677 = vpop.f32.mrb[0].mxu0
    %678 = vdwg.mxu0
    %v679 = vld [vmem:[#allocation2] sm:$0xff]
    %v680 = vld [vmem:[#allocation2 + $0x8] sm:$0xff]
    %v681 = vld [vmem:[#allocation2 + $0x10] sm:$0xff]
    %v682 = vld [vmem:[#allocation2 + $0x18] sm:$0xff]
    %v683 = vld [vmem:[#allocation2 + $0x20] sm:$0xff]
    %v684 = vld [vmem:[#allocation2 + $0x28] sm:$0xff]
    %v685 = vld [vmem:[#allocation2 + $0x30] sm:$0xff]
    %v686 = vld [vmem:[#allocation2 + $0x38] sm:$0xff]
    %v687 = vld [vmem:[#allocation2 + $0x40] sm:$0xff]
    %v688 = vld [vmem:[#allocation2 + $0x48] sm:$0xff]
    %v689 = vld [vmem:[#allocation2 + $0x50] sm:$0xff]
    %v690 = vld [vmem:[#allocation2 + $0x58] sm:$0xff]
    %v691 = vld [vmem:[#allocation2 + $0x60] sm:$0xff]
    %v692 = vld [vmem:[#allocation2 + $0x68] sm:$0xff]
    %v693 = vld [vmem:[#allocation2 + $0x70] sm:$0xff]
    %v694 = vld [vmem:[#allocation2 + $0x78] sm:$0xff]
    %v695 = vld [vmem:[%s7] sm:$0x1]
    %v697 = vlaneseq
    %v698 = vshrl.u32 %v697, 7
    %v699 = vsub.s32 0, %v698
    %v700 = vrot.slane %v695, %v699
    %702 = vmatprep.subr.mxu0 0.0
    %703 = vmatpush1.msra.mxu0 %v679
    %704 = vmatprep.subr.mxu0 0.0
    %705 = vmatpush1.msra.mxu0 %v680
    %706 = vmatprep.subr.mxu0 0.0
    %707 = vmatpush1.msra.mxu0 %v681
    %708 = vmatprep.subr.mxu0 0.0
    %709 = vmatpush1.msra.mxu0 %v682
    %710 = vmatprep.subr.mxu0 0.0
    %711 = vmatpush1.msra.mxu0 %v683
    %712 = vmatprep.subr.mxu0 0.0
    %713 = vmatpush1.msra.mxu0 %v684
    %714 = vmatprep.subr.mxu0 0.0
    %715 = vmatpush1.msra.mxu0 %v685
    %716 = vmatprep.subr.mxu0 0.0
    %717 = vmatpush1.msra.mxu0 %v686
    %718 = vmatprep.subr.mxu0 0.0
    %719 = vmatpush1.msra.mxu0 %v687
    %720 = vmatprep.subr.mxu0 0.0
    %721 = vmatpush1.msra.mxu0 %v688
    %722 = vmatprep.subr.mxu0 0.0
    %723 = vmatpush1.msra.mxu0 %v689
    %724 = vmatprep.subr.mxu0 0.0
    %725 = vmatpush1.msra.mxu0 %v690
    %726 = vmatprep.subr.mxu0 0.0
    %727 = vmatpush1.msra.mxu0 %v691
    %728 = vmatprep.subr.mxu0 0.0
    %729 = vmatpush1.msra.mxu0 %v692
    %730 = vmatprep.subr.mxu0 0.0
    %731 = vmatpush1.msra.mxu0 %v693
    %732 = vmatprep.subr.mxu0 0.0
    %733 = vmatpush1.msra.mxu0 %v694
    %734 = vmatprep.subr.mxu0 0.0
    %735 = vmatpush1.msra.mxu0 0.0
    %736 = vmatprep.subr.mxu0 0.0
    %737 = vmatpush1.msra.mxu0 0.0
    %738 = vmatprep.subr.mxu0 0.0
    %739 = vmatpush1.msra.mxu0 0.0
    %740 = vmatprep.subr.mxu0 0.0
    %741 = vmatpush1.msra.mxu0 0.0
    %742 = vmatprep.subr.mxu0 0.0
    %743 = vmatpush1.msra.mxu0 0.0
    %744 = vmatprep.subr.mxu0 0.0
    %745 = vmatpush1.msra.mxu0 0.0
    %746 = vmatprep.subr.mxu0 0.0
    %747 = vmatpush1.msra.mxu0 0.0
    %748 = vmatprep.subr.mxu0 0.0
    %749 = vmatpush1.msra.mxu0 0.0
    %750 = vmatprep.subr.mxu0 0.0
    %751 = vmatpush1.msra.mxu0 0.0
    %752 = vmatprep.subr.mxu0 0.0
    %753 = vmatpush1.msra.mxu0 0.0
    %754 = vmatprep.subr.mxu0 0.0
    %755 = vmatpush1.msra.mxu0 0.0
    %756 = vmatprep.subr.mxu0 0.0
    %757 = vmatpush1.msra.mxu0 0.0
    %758 = vmatprep.subr.mxu0 0.0
    %759 = vmatpush1.msra.mxu0 0.0
    %760 = vmatprep.subr.mxu0 0.0
    %761 = vmatpush1.msra.mxu0 0.0
    %762 = vmatprep.subr.mxu0 0.0
    %763 = vmatpush1.msra.mxu0 0.0
    %764 = vmatprep.subr.mxu0 0.0
    %765 = vmatpush1.msra.mxu0 0.0
    %766 = vmatprep.mubr.f32.mxu0 0.0
    %767 = vmatmul.mubr.f32.gmra.mrb[0].mxu0 %v676
    %v768 = vpop.f32.mrb[0].mxu0
    %v769 = vadd.f32 %v700, %v768
    %v770 = vpop.f32.mrb[0].mxu0
    %771 = vdwg.mxu0
    %v772 = vmax.f32 %v769, 0.0
    %v773 = vld [vmem:[#allocation4] sm:$0xff]
    %v774 = vld [vmem:[#allocation4 + $0x8] sm:$0xff]
    %v775 = vld [vmem:[#allocation4 + $0x10] sm:$0xff]
    %v776 = vld [vmem:[#allocation4 + $0x18] sm:$0xff]
    %v777 = vld [vmem:[#allocation4 + $0x20] sm:$0xff]
    %v778 = vld [vmem:[#allocation4 + $0x28] sm:$0xff]
    %v779 = vld [vmem:[#allocation4 + $0x30] sm:$0xff]
    %v780 = vld [vmem:[#allocation4 + $0x38] sm:$0xff]
    %v781 = vld [vmem:[#allocation4 + $0x40] sm:$0xff]
    %v782 = vld [vmem:[#allocation4 + $0x48] sm:$0xff]
    %v783 = vld [vmem:[#allocation4 + $0x50] sm:$0xff]
    %v784 = vld [vmem:[#allocation4 + $0x58] sm:$0xff]
    %v785 = vld [vmem:[#allocation4 + $0x60] sm:$0xff]
    %v786 = vld [vmem:[#allocation4 + $0x68] sm:$0xff]
    %v787 = vld [vmem:[#allocation4 + $0x70] sm:$0xff]
    %v788 = vld [vmem:[#allocation4 + $0x78] sm:$0xff]
    %v789 = vld [vmem:[#allocation4 + $0x80] sm:$0xff]
    %v790 = vld [vmem:[#allocation4 + $0x88] sm:$0xff]
    %v791 = vld [vmem:[#allocation4 + $0x90] sm:$0xff]
    %v792 = vld [vmem:[#allocation4 + $0x98] sm:$0xff]
    %v793 = vld [vmem:[#allocation4 + $0xa0] sm:$0xff]
    %v794 = vld [vmem:[#allocation4 + $0xa8] sm:$0xff]
    %v795 = vld [vmem:[#allocation4 + $0xb0] sm:$0xff]
    %v796 = vld [vmem:[#allocation4 + $0xb8] sm:$0xff]
    %v797 = vld [vmem:[#allocation4 + $0xc0] sm:$0xff]
    %v798 = vld [vmem:[#allocation4 + $0xc8] sm:$0xff]
    %v799 = vld [vmem:[#allocation4 + $0xd0] sm:$0xff]
    %v800 = vld [vmem:[#allocation4 + $0xd8] sm:$0xff]
    %v801 = vld [vmem:[#allocation4 + $0xe0] sm:$0xff]
    %v802 = vld [vmem:[#allocation4 + $0xe8] sm:$0xff]
    %v803 = vld [vmem:[#allocation4 + $0xf0] sm:$0xff]
    %v804 = vld [vmem:[#allocation4 + $0xf8] sm:$0xff]
    %v805 = vld [vmem:[%s9] sm:$0x3]
    %v807 = vlaneseq
    %v808 = vshrl.u32 %v807, 7
    %v809 = vsub.s32 0, %v808
    %v810 = vrot.slane %v805, %v809
    %v811 = vlaneseq
    %v812 = vshrl.u32 %v811, 7
    %v813 = vsub.s32 1, %v812
    %v814 = vrot.slane %v805, %v813
    %817 = vmatprep.subr.mxu0 %v774
    %818 = vmatpush1.msra.mxu0 %v773
    %819 = vmatprep.subr.mxu0 %v776
    %820 = vmatpush1.msra.mxu0 %v775
    %821 = vmatprep.subr.mxu0 %v778
    %822 = vmatpush1.msra.mxu0 %v777
    %823 = vmatprep.subr.mxu0 %v780
    %824 = vmatpush1.msra.mxu0 %v779
    %825 = vmatprep.subr.mxu0 %v782
    %826 = vmatpush1.msra.mxu0 %v781
    %827 = vmatprep.subr.mxu0 %v784
    %828 = vmatpush1.msra.mxu0 %v783
    %829 = vmatprep.subr.mxu0 %v786
    %830 = vmatpush1.msra.mxu0 %v785
    %831 = vmatprep.subr.mxu0 %v788
    %832 = vmatpush1.msra.mxu0 %v787
    %833 = vmatprep.subr.mxu0 %v790
    %834 = vmatpush1.msra.mxu0 %v789
    %835 = vmatprep.subr.mxu0 %v792
    %836 = vmatpush1.msra.mxu0 %v791
    %837 = vmatprep.subr.mxu0 %v794
    %838 = vmatpush1.msra.mxu0 %v793
    %839 = vmatprep.subr.mxu0 %v796
    %840 = vmatpush1.msra.mxu0 %v795
    %841 = vmatprep.subr.mxu0 %v798
    %842 = vmatpush1.msra.mxu0 %v797
    %843 = vmatprep.subr.mxu0 %v800
    %844 = vmatpush1.msra.mxu0 %v799
    %845 = vmatprep.subr.mxu0 %v802
    %846 = vmatpush1.msra.mxu0 %v801
    %847 = vmatprep.subr.mxu0 %v804
    %848 = vmatpush1.msra.mxu0 %v803
    %849 = vmatprep.subr.mxu0 0.0
    %850 = vmatpush1.msra.mxu0 0.0
    %851 = vmatprep.subr.mxu0 0.0
    %852 = vmatpush1.msra.mxu0 0.0
    %853 = vmatprep.subr.mxu0 0.0
    %854 = vmatpush1.msra.mxu0 0.0
    %855 = vmatprep.subr.mxu0 0.0
    %856 = vmatpush1.msra.mxu0 0.0
    %857 = vmatprep.subr.mxu0 0.0
    %858 = vmatpush1.msra.mxu0 0.0
    %859 = vmatprep.subr.mxu0 0.0
    %860 = vmatpush1.msra.mxu0 0.0
    %861 = vmatprep.subr.mxu0 0.0
    %862 = vmatpush1.msra.mxu0 0.0
    %863 = vmatprep.subr.mxu0 0.0
    %864 = vmatpush1.msra.mxu0 0.0
    %865 = vmatprep.subr.mxu0 0.0
    %866 = vmatpush1.msra.mxu0 0.0
    %867 = vmatprep.subr.mxu0 0.0
    %868 = vmatpush1.msra.mxu0 0.0
    %869 = vmatprep.subr.mxu0 0.0
    %870 = vmatpush1.msra.mxu0 0.0
    %871 = vmatprep.subr.mxu0 0.0
    %872 = vmatpush1.msra.mxu0 0.0
    %873 = vmatprep.subr.mxu0 0.0
    %874 = vmatpush1.msra.mxu0 0.0
    %875 = vmatprep.subr.mxu0 0.0
    %876 = vmatpush1.msra.mxu0 0.0
    %877 = vmatprep.subr.mxu0 0.0
    %878 = vmatpush1.msra.mxu0 0.0
    %879 = vmatprep.subr.mxu0 0.0
    %880 = vmatpush1.msra.mxu0 0.0
    %881 = vmatprep.mubr.f32.mxu0 0.0
    %882 = vmatmul.mubr.f32.gmra.mrb[0].mxu0 %v772
    %v883 = vpop.f32.mrb[0].mxu0
    %v884 = vadd.f32 %v810, %v883
    %v885 = vpop.f32.mrb[0].mxu0
    %v886 = vadd.f32 %v814, %v885
    %887 = vdwg.mxu0
    %v888 = vld [vmem:[%s10] sm:$0xff]
    %v889 = vld [vmem:[%s10 + $0x8] sm:$0xff]
    %v890 = vld [vmem:[%s10 + $0x10] sm:$0xff]
    %v891 = vld [vmem:[%s10 + $0x18] sm:$0xff]
    %v892 = vld [vmem:[%s10 + $0x20] sm:$0xff]
    %v893 = vld [vmem:[%s10 + $0x28] sm:$0xff]
    %v894 = vld [vmem:[%s10 + $0x30] sm:$0xff]
    %v895 = vld [vmem:[%s10 + $0x38] sm:$0xff]
    %v896 = vld [vmem:[%s10 + $0x40] sm:$0xff]
    %v897 = vld [vmem:[%s10 + $0x48] sm:$0xff]
    %v898 = vld [vmem:[%s10 + $0x50] sm:$0xff]
    %v899 = vld [vmem:[%s10 + $0x58] sm:$0xff]
    %v900 = vld [vmem:[%s10 + $0x60] sm:$0xff]
    %v901 = vld [vmem:[%s10 + $0x68] sm:$0xff]
    %v902 = vld [vmem:[%s10 + $0x70] sm:$0xff]
    %v903 = vld [vmem:[%s10 + $0x78] sm:$0xff]
    %vm904 = vcmask 64512
    %v906 = vsel %vm904, %v888, 0
    %v909 = vsel %vm904, %v889, 0
    %v912 = vsel %vm904, %v890, 0
    %v915 = vsel %vm904, %v891, 0
    %v918 = vsel %vm904, %v892, 0
    %v921 = vsel %vm904, %v893, 0
    %v924 = vsel %vm904, %v894, 0
    %v927 = vsel %vm904, %v895, 0
    %v930 = vsel %vm904, %v896, 0
    %v933 = vsel %vm904, %v897, 0
    %v936 = vsel %vm904, %v898, 0
    %v939 = vsel %vm904, %v899, 0
    %v942 = vsel %vm904, %v900, 0
    %v945 = vsel %vm904, %v901, 0
    %v948 = vsel %vm904, %v902, 0
    %v951 = vsel %vm904, %v903, 0
    %953 = vmatprep.subr.mxu0 %v886
    %954 = vmatpush1.msra.mxu0 %v884
    %955 = vmatprep.subr.mxu0 0.0
    %956 = vmatpush1.msra.mxu0 0.0
    %957 = vmatprep.subr.mxu0 0.0
    %958 = vmatpush1.msra.mxu0 0.0
    %959 = vmatprep.subr.mxu0 0.0
    %960 = vmatpush1.msra.mxu0 0.0
    %961 = vmatprep.subr.mxu0 0.0
    %962 = vmatpush1.msra.mxu0 0.0
    %963 = vmatprep.subr.mxu0 0.0
    %964 = vmatpush1.msra.mxu0 0.0
    %965 = vmatprep.subr.mxu0 0.0
    %966 = vmatpush1.msra.mxu0 0.0
    %967 = vmatprep.subr.mxu0 0.0
    %968 = vmatpush1.msra.mxu0 0.0
    %969 = vmatprep.subr.mxu0 0.0
    %970 = vmatpush1.msra.mxu0 0.0
    %971 = vmatprep.subr.mxu0 0.0
    %972 = vmatpush1.msra.mxu0 0.0
    %973 = vmatprep.subr.mxu0 0.0
    %974 = vmatpush1.msra.mxu0 0.0
    %975 = vmatprep.subr.mxu0 0.0
    %976 = vmatpush1.msra.mxu0 0.0
    %977 = vmatprep.subr.mxu0 0.0
    %978 = vmatpush1.msra.mxu0 0.0
    %979 = vmatprep.subr.mxu0 0.0
    %980 = vmatpush1.msra.mxu0 0.0
    %981 = vmatprep.subr.mxu0 0.0
    %982 = vmatpush1.msra.mxu0 0.0
    %983 = vmatprep.subr.mxu0 0.0
    %984 = vmatpush1.msra.mxu0 0.0
    %985 = vmatprep.subr.mxu0 0.0
    %986 = vmatpush1.msra.mxu0 0.0
    %987 = vmatprep.subr.mxu0 0.0
    %988 = vmatpush1.msra.mxu0 0.0
    %989 = vmatprep.subr.mxu0 0.0
    %990 = vmatpush1.msra.mxu0 0.0
    %991 = vmatprep.subr.mxu0 0.0
    %992 = vmatpush1.msra.mxu0 0.0
    %993 = vmatprep.subr.mxu0 0.0
    %994 = vmatpush1.msra.mxu0 0.0
    %995 = vmatprep.subr.mxu0 0.0
    %996 = vmatpush1.msra.mxu0 0.0
    %997 = vmatprep.subr.mxu0 0.0
    %998 = vmatpush1.msra.mxu0 0.0
    %999 = vmatprep.subr.mxu0 0.0
    %1000 = vmatpush1.msra.mxu0 0.0
    %1001 = vmatprep.subr.mxu0 0.0
    %1002 = vmatpush1.msra.mxu0 0.0
    %1003 = vmatprep.subr.mxu0 0.0
    %1004 = vmatpush1.msra.mxu0 0.0
    %1005 = vmatprep.subr.mxu0 0.0
    %1006 = vmatpush1.msra.mxu0 0.0
    %1007 = vmatprep.subr.mxu0 0.0
    %1008 = vmatpush1.msra.mxu0 0.0
    %1009 = vmatprep.subr.mxu0 0.0
    %1010 = vmatpush1.msra.mxu0 0.0
    %1011 = vmatprep.subr.mxu0 0.0
    %1012 = vmatpush1.msra.mxu0 0.0
    %1013 = vmatprep.subr.mxu0 0.0
    %1014 = vmatpush1.msra.mxu0 0.0
    %1015 = vmatprep.subr.mxu0 0.0
    %1016 = vmatpush1.msra.mxu0 0.0
    %1017 = vmatprep.mubr.f32.mxu0 0.0
    %1018 = vmatmul.mubr.f32.gmra.mrb[0].mxu0 %v906
    %v1019 = vpop.f32.mrb[0].mxu0
    %v1020 = vadd.f32 0.0, %v1019
    %v1021 = vpop.f32.mrb[0].mxu0
    %v1022 = vadd.f32 0.0, %v1021
    %1023 = vmatprep.mubr.f32.mxu0 0.0
    %1024 = vmatmul.mubr.f32.gmra.mrb[0].mxu0 %v909
    %v1025 = vpop.f32.mrb[0].mxu0
    %v1026 = vadd.f32 0.0, %v1025
    %v1027 = vpop.f32.mrb[0].mxu0
    %v1028 = vadd.f32 0.0, %v1027
    %1029 = vmatprep.mubr.f32.mxu0 0.0
    %1030 = vmatmul.mubr.f32.gmra.mrb[0].mxu0 %v912
    %v1031 = vpop.f32.mrb[0].mxu0
    %v1032 = vadd.f32 0.0, %v1031
    %v1033 = vpop.f32.mrb[0].mxu0
    %v1034 = vadd.f32 0.0, %v1033
    %1035 = vmatprep.mubr.f32.mxu0 0.0
    %1036 = vmatmul.mubr.f32.gmra.mrb[0].mxu0 %v915
    %v1037 = vpop.f32.mrb[0].mxu0
    %v1038 = vadd.f32 0.0, %v1037
    %v1039 = vpop.f32.mrb[0].mxu0
    %v1040 = vadd.f32 0.0, %v1039
    %1041 = vmatprep.mubr.f32.mxu0 0.0
    %1042 = vmatmul.mubr.f32.gmra.mrb[0].mxu0 %v918
    %v1043 = vpop.f32.mrb[0].mxu0
    %v1044 = vadd.f32 0.0, %v1043
    %v1045 = vpop.f32.mrb[0].mxu0
    %v1046 = vadd.f32 0.0, %v1045
    %1047 = vmatprep.mubr.f32.mxu0 0.0
    %1048 = vmatmul.mubr.f32.gmra.mrb[0].mxu0 %v921
    %v1049 = vpop.f32.mrb[0].mxu0
    %v1050 = vadd.f32 0.0, %v1049
    %v1051 = vpop.f32.mrb[0].mxu0
    %v1052 = vadd.f32 0.0, %v1051
    %1053 = vmatprep.mubr.f32.mxu0 0.0
    %1054 = vmatmul.mubr.f32.gmra.mrb[0].mxu0 %v924
    %v1055 = vpop.f32.mrb[0].mxu0
    %v1056 = vadd.f32 0.0, %v1055
    %v1057 = vpop.f32.mrb[0].mxu0
    %v1058 = vadd.f32 0.0, %v1057
    %1059 = vmatprep.mubr.f32.mxu0 0.0
    %1060 = vmatmul.mubr.f32.gmra.mrb[0].mxu0 %v927
    %v1061 = vpop.f32.mrb[0].mxu0
    %v1062 = vadd.f32 0.0, %v1061
    %v1063 = vpop.f32.mrb[0].mxu0
    %v1064 = vadd.f32 0.0, %v1063
    %1065 = vmatprep.mubr.f32.mxu0 0.0
    %1066 = vmatmul.mubr.f32.gmra.mrb[0].mxu0 %v930
    %v1067 = vpop.f32.mrb[0].mxu0
    %v1068 = vadd.f32 0.0, %v1067
    %v1069 = vpop.f32.mrb[0].mxu0
    %v1070 = vadd.f32 0.0, %v1069
    %1071 = vmatprep.mubr.f32.mxu0 0.0
    %1072 = vmatmul.mubr.f32.gmra.mrb[0].mxu0 %v933
    %v1073 = vpop.f32.mrb[0].mxu0
    %v1074 = vadd.f32 0.0, %v1073
    %v1075 = vpop.f32.mrb[0].mxu0
    %v1076 = vadd.f32 0.0, %v1075
    %1077 = vmatprep.mubr.f32.mxu0 0.0
    %1078 = vmatmul.mubr.f32.gmra.mrb[0].mxu0 %v936
    %v1079 = vpop.f32.mrb[0].mxu0
    %v1080 = vadd.f32 0.0, %v1079
    %v1081 = vpop.f32.mrb[0].mxu0
    %v1082 = vadd.f32 0.0, %v1081
    %1083 = vmatprep.mubr.f32.mxu0 0.0
    %1084 = vmatmul.mubr.f32.gmra.mrb[0].mxu0 %v939
    %v1085 = vpop.f32.mrb[0].mxu0
    %v1086 = vadd.f32 0.0, %v1085
    %v1087 = vpop.f32.mrb[0].mxu0
    %v1088 = vadd.f32 0.0, %v1087
    %1089 = vmatprep.mubr.f32.mxu0 0.0
    %1090 = vmatmul.mubr.f32.gmra.mrb[0].mxu0 %v942
    %v1091 = vpop.f32.mrb[0].mxu0
    %v1092 = vadd.f32 0.0, %v1091
    %v1093 = vpop.f32.mrb[0].mxu0
    %v1094 = vadd.f32 0.0, %v1093
    %1095 = vmatprep.mubr.f32.mxu0 0.0
    %1096 = vmatmul.mubr.f32.gmra.mrb[0].mxu0 %v945
    %v1097 = vpop.f32.mrb[0].mxu0
    %v1098 = vadd.f32 0.0, %v1097
    %v1099 = vpop.f32.mrb[0].mxu0
    %v1100 = vadd.f32 0.0, %v1099
    %1101 = vmatprep.mubr.f32.mxu0 0.0
    %1102 = vmatmul.mubr.f32.gmra.mrb[0].mxu0 %v948
    %v1103 = vpop.f32.mrb[0].mxu0
    %v1104 = vadd.f32 0.0, %v1103
    %v1105 = vpop.f32.mrb[0].mxu0
    %v1106 = vadd.f32 0.0, %v1105
    %1107 = vmatprep.mubr.f32.mxu0 0.0
    %1108 = vmatmul.mubr.f32.gmra.mrb[0].mxu0 %v951
    %v1109 = vpop.f32.mrb[0].mxu0
    %v1110 = vadd.f32 0.0, %v1109
    %v1111 = vpop.f32.mrb[0].mxu0
    %v1112 = vadd.f32 0.0, %v1111
    %1113 = vdwg.mxu0
    %v1114 = vmul.f32 %v420, %v1020
    %v1115 = vmul.f32 %v422, %v1022
    %v1116 = vmul.f32 %v424, %v1026
    %v1117 = vmul.f32 %v426, %v1028
    %v1118 = vmul.f32 %v430, %v1032
    %v1119 = vmul.f32 %v432, %v1034
    %v1120 = vmul.f32 %v434, %v1038
    %v1121 = vmul.f32 %v436, %v1040
    %v1122 = vmul.f32 %v440, %v1044
    %v1123 = vmul.f32 %v442, %v1046
    %v1124 = vmul.f32 %v444, %v1050
    %v1125 = vmul.f32 %v446, %v1052
    %v1126 = vmul.f32 %v450, %v1056
    %v1127 = vmul.f32 %v452, %v1058
    %v1128 = vmul.f32 %v454, %v1062
    %v1129 = vmul.f32 %v456, %v1064
    %v1130 = vmul.f32 %v460, %v1068
    %v1131 = vmul.f32 %v462, %v1070
    %v1132 = vmul.f32 %v464, %v1074
    %v1133 = vmul.f32 %v466, %v1076
    %v1134 = vmul.f32 %v470, %v1080
    %v1135 = vmul.f32 %v472, %v1082
    %v1136 = vmul.f32 %v474, %v1086
    %v1137 = vmul.f32 %v476, %v1088
    %v1138 = vmul.f32 %v480, %v1092
    %v1139 = vmul.f32 %v482, %v1094
    %v1140 = vmul.f32 %v484, %v1098
    %v1141 = vmul.f32 %v486, %v1100
    %v1142 = vmul.f32 %v490, %v1104
    %v1143 = vmul.f32 %v492, %v1106
    %v1144 = vmul.f32 %v494, %v1110
    %v1145 = vmul.f32 %v496, %v1112
    %v1146 = vpack.c.bf16 %v1116, %v1114
    %v1147 = vpack.c.bf16 %v1117, %v1115
    %v1148 = vpack.c.bf16 %v1120, %v1118
    %v1149 = vpack.c.bf16 %v1121, %v1119
    %v1150 = vpack.c.bf16 %v1124, %v1122
    %v1151 = vpack.c.bf16 %v1125, %v1123
    %v1152 = vpack.c.bf16 %v1128, %v1126
    %v1153 = vpack.c.bf16 %v1129, %v1127
    %v1154 = vpack.c.bf16 %v1132, %v1130
    %v1155 = vpack.c.bf16 %v1133, %v1131
    %v1156 = vpack.c.bf16 %v1136, %v1134
    %v1157 = vpack.c.bf16 %v1137, %v1135
    %v1158 = vpack.c.bf16 %v1140, %v1138
    %v1159 = vpack.c.bf16 %v1141, %v1139
    %v1160 = vpack.c.bf16 %v1144, %v1142
    %v1161 = vpack.c.bf16 %v1145, %v1143
    %v1162 = vld [vmem:[#allocation6] sm:$0xff]
    %v1163 = vld [vmem:[#allocation6 + $0x8] sm:$0xff]
    %v1164 = vld [vmem:[#allocation6 + $0x10] sm:$0xff]
    %v1165 = vld [vmem:[#allocation6 + $0x18] sm:$0xff]
    %v1166 = vld [vmem:[#allocation6 + $0x20] sm:$0xff]
    %v1167 = vld [vmem:[#allocation6 + $0x28] sm:$0xff]
    %v1168 = vld [vmem:[#allocation6 + $0x30] sm:$0xff]
    %v1169 = vld [vmem:[#allocation6 + $0x38] sm:$0xff]
    %v1170 = vld [vmem:[#allocation6 + $0x40] sm:$0xff]
    %v1171 = vld [vmem:[#allocation6 + $0x48] sm:$0xff]
    %v1172 = vld [vmem:[#allocation6 + $0x50] sm:$0xff]
    %v1173 = vld [vmem:[#allocation6 + $0x58] sm:$0xff]
    %v1174 = vld [vmem:[#allocation6 + $0x60] sm:$0xff]
    %v1175 = vld [vmem:[#allocation6 + $0x68] sm:$0xff]
    %v1176 = vld [vmem:[#allocation6 + $0x70] sm:$0xff]
    %v1177 = vld [vmem:[#allocation6 + $0x78] sm:$0xff]
    %v1178 = vld [vmem:[#allocation6 + $0x80] sm:$0xff]
    %v1179 = vld [vmem:[#allocation6 + $0x88] sm:$0xff]
    %v1180 = vld [vmem:[#allocation6 + $0x90] sm:$0xff]
    %v1181 = vld [vmem:[#allocation6 + $0x98] sm:$0xff]
    %v1182 = vld [vmem:[#allocation6 + $0xa0] sm:$0xff]
    %v1183 = vld [vmem:[#allocation6 + $0xa8] sm:$0xff]
    %v1184 = vld [vmem:[#allocation6 + $0xb0] sm:$0xff]
    %v1185 = vld [vmem:[#allocation6 + $0xb8] sm:$0xff]
    %v1186 = vld [vmem:[#allocation6 + $0xc0] sm:$0xff]
    %v1187 = vld [vmem:[#allocation6 + $0xc8] sm:$0xff]
    %v1188 = vld [vmem:[#allocation6 + $0xd0] sm:$0xff]
    %v1189 = vld [vmem:[#allocation6 + $0xd8] sm:$0xff]
    %v1190 = vld [vmem:[#allocation6 + $0xe0] sm:$0xff]
    %v1191 = vld [vmem:[#allocation6 + $0xe8] sm:$0xff]
    %v1192 = vld [vmem:[#allocation6 + $0xf0] sm:$0xff]
    %v1193 = vld [vmem:[#allocation6 + $0xf8] sm:$0xff]
    %v1194 = vld [vmem:[#allocation6 + $0x100] sm:$0xff]
    %v1195 = vld [vmem:[#allocation6 + $0x108] sm:$0xff]
    %v1196 = vld [vmem:[#allocation6 + $0x110] sm:$0xff]
    %v1197 = vld [vmem:[#allocation6 + $0x118] sm:$0xff]
    %v1198 = vld [vmem:[#allocation6 + $0x120] sm:$0xff]
    %v1199 = vld [vmem:[#allocation6 + $0x128] sm:$0xff]
    %v1200 = vld [vmem:[#allocation6 + $0x130] sm:$0xff]
    %v1201 = vld [vmem:[#allocation6 + $0x138] sm:$0xff]
    %v1202 = vld [vmem:[#allocation6 + $0x140] sm:$0xff]
    %v1203 = vld [vmem:[#allocation6 + $0x148] sm:$0xff]
    %v1204 = vld [vmem:[#allocation6 + $0x150] sm:$0xff]
    %v1205 = vld [vmem:[#allocation6 + $0x158] sm:$0xff]
    %v1206 = vld [vmem:[#allocation6 + $0x160] sm:$0xff]
    %v1207 = vld [vmem:[#allocation6 + $0x168] sm:$0xff]
    %v1208 = vld [vmem:[#allocation6 + $0x170] sm:$0xff]
    %v1209 = vld [vmem:[#allocation6 + $0x178] sm:$0xff]
    %v1210 = vld [vmem:[#allocation6 + $0x180] sm:$0xff]
    %v1211 = vld [vmem:[#allocation6 + $0x188] sm:$0xff]
    %v1212 = vld [vmem:[#allocation6 + $0x190] sm:$0xff]
    %v1213 = vld [vmem:[#allocation6 + $0x198] sm:$0xff]
    %v1214 = vld [vmem:[#allocation6 + $0x1a0] sm:$0xff]
    %v1215 = vld [vmem:[#allocation6 + $0x1a8] sm:$0xff]
    %v1216 = vld [vmem:[#allocation6 + $0x1b0] sm:$0xff]
    %v1217 = vld [vmem:[#allocation6 + $0x1b8] sm:$0xff]
    %v1218 = vld [vmem:[#allocation6 + $0x1c0] sm:$0xff]
    %v1219 = vld [vmem:[#allocation6 + $0x1c8] sm:$0xff]
    %v1220 = vld [vmem:[#allocation6 + $0x1d0] sm:$0xff]
    %v1221 = vld [vmem:[#allocation6 + $0x1d8] sm:$0xff]
    %v1222 = vld [vmem:[#allocation6 + $0x1e0] sm:$0xff]
    %v1223 = vld [vmem:[#allocation6 + $0x1e8] sm:$0xff]
    %v1224 = vld [vmem:[#allocation6 + $0x1f0] sm:$0xff]
    %v1225 = vld [vmem:[#allocation6 + $0x1f8] sm:$0xff]
    %v1226 = vld [vmem:[#allocation6 + $0x200] sm:$0xff]
    %v1227 = vld [vmem:[#allocation6 + $0x208] sm:$0xff]
    %v1228 = vld [vmem:[#allocation6 + $0x210] sm:$0xff]
    %v1229 = vld [vmem:[#allocation6 + $0x218] sm:$0xff]
    %v1230 = vld [vmem:[#allocation6 + $0x220] sm:$0xff]
    %v1231 = vld [vmem:[#allocation6 + $0x228] sm:$0xff]
    %v1232 = vld [vmem:[#allocation6 + $0x230] sm:$0xff]
    %v1233 = vld [vmem:[#allocation6 + $0x238] sm:$0xff]
    %v1234 = vld [vmem:[#allocation6 + $0x240] sm:$0xff]
    %v1235 = vld [vmem:[#allocation6 + $0x248] sm:$0xff]
    %v1236 = vld [vmem:[#allocation6 + $0x250] sm:$0xff]
    %v1237 = vld [vmem:[#allocation6 + $0x258] sm:$0xff]
    %v1238 = vld [vmem:[#allocation6 + $0x260] sm:$0xff]
    %v1239 = vld [vmem:[#allocation6 + $0x268] sm:$0xff]
    %v1240 = vld [vmem:[#allocation6 + $0x270] sm:$0xff]
    %v1241 = vld [vmem:[#allocation6 + $0x278] sm:$0xff]
    %v1242 = vld [vmem:[#allocation6 + $0x280] sm:$0xff]
    %v1243 = vld [vmem:[#allocation6 + $0x288] sm:$0xff]
    %v1244 = vld [vmem:[#allocation6 + $0x290] sm:$0xff]
    %v1245 = vld [vmem:[#allocation6 + $0x298] sm:$0xff]
    %v1246 = vld [vmem:[#allocation6 + $0x2a0] sm:$0xff]
    %v1247 = vld [vmem:[#allocation6 + $0x2a8] sm:$0xff]
    %v1248 = vld [vmem:[#allocation6 + $0x2b0] sm:$0xff]
    %v1249 = vld [vmem:[#allocation6 + $0x2b8] sm:$0xff]
    %v1250 = vld [vmem:[#allocation6 + $0x2c0] sm:$0xff]
    %v1251 = vld [vmem:[#allocation6 + $0x2c8] sm:$0xff]
    %v1252 = vld [vmem:[#allocation6 + $0x2d0] sm:$0xff]
    %v1253 = vld [vmem:[#allocation6 + $0x2d8] sm:$0xff]
    %v1254 = vld [vmem:[#allocation6 + $0x2e0] sm:$0xff]
    %v1255 = vld [vmem:[#allocation6 + $0x2e8] sm:$0xff]
    %v1256 = vld [vmem:[#allocation6 + $0x2f0] sm:$0xff]
    %v1257 = vld [vmem:[#allocation6 + $0x2f8] sm:$0xff]
    %v1258 = vld [vmem:[#allocation6 + $0x300] sm:$0xff]
    %v1259 = vld [vmem:[#allocation6 + $0x308] sm:$0xff]
    %v1260 = vld [vmem:[#allocation6 + $0x310] sm:$0xff]
    %v1261 = vld [vmem:[#allocation6 + $0x318] sm:$0xff]
    %v1262 = vld [vmem:[#allocation6 + $0x320] sm:$0xff]
    %v1263 = vld [vmem:[#allocation6 + $0x328] sm:$0xff]
    %v1264 = vld [vmem:[#allocation6 + $0x330] sm:$0xff]
    %v1265 = vld [vmem:[#allocation6 + $0x338] sm:$0xff]
    %v1266 = vld [vmem:[#allocation6 + $0x340] sm:$0xff]
    %v1267 = vld [vmem:[#allocation6 + $0x348] sm:$0xff]
    %v1268 = vld [vmem:[#allocation6 + $0x350] sm:$0xff]
    %v1269 = vld [vmem:[#allocation6 + $0x358] sm:$0xff]
    %v1270 = vld [vmem:[#allocation6 + $0x360] sm:$0xff]
    %v1271 = vld [vmem:[#allocation6 + $0x368] sm:$0xff]
    %v1272 = vld [vmem:[#allocation6 + $0x370] sm:$0xff]
    %v1273 = vld [vmem:[#allocation6 + $0x378] sm:$0xff]
    %v1274 = vld [vmem:[#allocation6 + $0x380] sm:$0xff]
    %v1275 = vld [vmem:[#allocation6 + $0x388] sm:$0xff]
    %v1276 = vld [vmem:[#allocation6 + $0x390] sm:$0xff]
    %v1277 = vld [vmem:[#allocation6 + $0x398] sm:$0xff]
    %v1278 = vld [vmem:[#allocation6 + $0x3a0] sm:$0xff]
    %v1279 = vld [vmem:[#allocation6 + $0x3a8] sm:$0xff]
    %v1280 = vld [vmem:[#allocation6 + $0x3b0] sm:$0xff]
    %v1281 = vld [vmem:[#allocation6 + $0x3b8] sm:$0xff]
    %v1282 = vld [vmem:[#allocation6 + $0x3c0] sm:$0xff]
    %v1283 = vld [vmem:[#allocation6 + $0x3c8] sm:$0xff]
    %v1284 = vld [vmem:[#allocation6 + $0x3d0] sm:$0xff]
    %v1285 = vld [vmem:[#allocation6 + $0x3d8] sm:$0xff]
    %v1286 = vld [vmem:[#allocation6 + $0x3e0] sm:$0xff]
    %v1287 = vld [vmem:[#allocation6 + $0x3e8] sm:$0xff]
    %v1288 = vld [vmem:[#allocation6 + $0x3f0] sm:$0xff]
    %v1289 = vld [vmem:[#allocation6 + $0x3f8] sm:$0xff]
    %v1290 = vld [vmem:[%s12] sm:$0xff]
    %v1292 = vlaneseq
    %v1293 = vshrl.u32 %v1292, 7
    %v1294 = vsub.s32 0, %v1293
    %v1295 = vrot.slane %v1290, %v1294
    %v1296 = vlaneseq
    %v1297 = vshrl.u32 %v1296, 7
    %v1298 = vsub.s32 1, %v1297
    %v1299 = vrot.slane %v1290, %v1298
    %v1300 = vlaneseq
    %v1301 = vshrl.u32 %v1300, 7
    %v1302 = vsub.s32 2, %v1301
    %v1303 = vrot.slane %v1290, %v1302
    %v1304 = vlaneseq
    %v1305 = vshrl.u32 %v1304, 7
    %v1306 = vsub.s32 3, %v1305
    %v1307 = vrot.slane %v1290, %v1306
    %v1308 = vlaneseq
    %v1309 = vshrl.u32 %v1308, 7
    %v1310 = vsub.s32 4, %v1309
    %v1311 = vrot.slane %v1290, %v1310
    %v1312 = vlaneseq
    %v1313 = vshrl.u32 %v1312, 7
    %v1314 = vsub.s32 5, %v1313
    %v1315 = vrot.slane %v1290, %v1314
    %v1316 = vlaneseq
    %v1317 = vshrl.u32 %v1316, 7
    %v1318 = vsub.s32 6, %v1317
    %v1319 = vrot.slane %v1290, %v1318
    %v1320 = vlaneseq
    %v1321 = vshrl.u32 %v1320, 7
    %v1322 = vsub.s32 7, %v1321
    %v1323 = vrot.slane %v1290, %v1322
    %v1460 = vunpack.c.l.b16 %v1162
    %v1461 = vunpack.c.h.b16 %v1162
    %v1462 = vunpack.c.l.b16 %v1163
    %v1463 = vunpack.c.h.b16 %v1163
    %v1464 = vunpack.c.l.b16 %v1164
    %v1465 = vunpack.c.h.b16 %v1164
    %v1466 = vunpack.c.l.b16 %v1165
    %v1467 = vunpack.c.h.b16 %v1165
    %v1468 = vunpack.c.l.b16 %v1166
    %v1469 = vunpack.c.h.b16 %v1166
    %v1470 = vunpack.c.l.b16 %v1167
    %v1471 = vunpack.c.h.b16 %v1167
    %v1472 = vunpack.c.l.b16 %v1168
    %v1473 = vunpack.c.h.b16 %v1168
    %v1474 = vunpack.c.l.b16 %v1169
    %v1475 = vunpack.c.h.b16 %v1169
    %v1476 = vunpack.c.l.b16 %v1170
    %v1477 = vunpack.c.h.b16 %v1170
    %v1478 = vunpack.c.l.b16 %v1171
    %v1479 = vunpack.c.h.b16 %v1171
    %v1480 = vunpack.c.l.b16 %v1172
    %v1481 = vunpack.c.h.b16 %v1172
    %v1482 = vunpack.c.l.b16 %v1173
    %v1483 = vunpack.c.h.b16 %v1173
    %v1484 = vunpack.c.l.b16 %v1174
    %v1485 = vunpack.c.h.b16 %v1174
    %v1486 = vunpack.c.l.b16 %v1175
    %v1487 = vunpack.c.h.b16 %v1175
    %v1488 = vunpack.c.l.b16 %v1176
    %v1489 = vunpack.c.h.b16 %v1176
    %v1490 = vunpack.c.l.b16 %v1177
    %v1491 = vunpack.c.h.b16 %v1177
    %v1492 = vunpack.c.l.b16 %v1178
    %v1493 = vunpack.c.h.b16 %v1178
    %v1494 = vunpack.c.l.b16 %v1179
    %v1495 = vunpack.c.h.b16 %v1179
    %v1496 = vunpack.c.l.b16 %v1180
    %v1497 = vunpack.c.h.b16 %v1180
    %v1498 = vunpack.c.l.b16 %v1181
    %v1499 = vunpack.c.h.b16 %v1181
    %v1500 = vunpack.c.l.b16 %v1182
    %v1501 = vunpack.c.h.b16 %v1182
    %v1502 = vunpack.c.l.b16 %v1183
    %v1503 = vunpack.c.h.b16 %v1183
    %v1504 = vunpack.c.l.b16 %v1184
    %v1505 = vunpack.c.h.b16 %v1184
    %v1506 = vunpack.c.l.b16 %v1185
    %v1507 = vunpack.c.h.b16 %v1185
    %v1508 = vunpack.c.l.b16 %v1186
    %v1509 = vunpack.c.h.b16 %v1186
    %v1510 = vunpack.c.l.b16 %v1187
    %v1511 = vunpack.c.h.b16 %v1187
    %v1512 = vunpack.c.l.b16 %v1188
    %v1513 = vunpack.c.h.b16 %v1188
    %v1514 = vunpack.c.l.b16 %v1189
    %v1515 = vunpack.c.h.b16 %v1189
    %v1516 = vunpack.c.l.b16 %v1190
    %v1517 = vunpack.c.h.b16 %v1190
    %v1518 = vunpack.c.l.b16 %v1191
    %v1519 = vunpack.c.h.b16 %v1191
    %v1520 = vunpack.c.l.b16 %v1192
    %v1521 = vunpack.c.h.b16 %v1192
    %v1522 = vunpack.c.l.b16 %v1193
    %v1523 = vunpack.c.h.b16 %v1193
    %v1524 = vunpack.c.l.b16 %v1194
    %v1525 = vunpack.c.h.b16 %v1194
    %v1526 = vunpack.c.l.b16 %v1195
    %v1527 = vunpack.c.h.b16 %v1195
    %v1528 = vunpack.c.l.b16 %v1196
    %v1529 = vunpack.c.h.b16 %v1196
    %v1530 = vunpack.c.l.b16 %v1197
    %v1531 = vunpack.c.h.b16 %v1197
    %v1532 = vunpack.c.l.b16 %v1198
    %v1533 = vunpack.c.h.b16 %v1198
    %v1534 = vunpack.c.l.b16 %v1199
    %v1535 = vunpack.c.h.b16 %v1199
    %v1536 = vunpack.c.l.b16 %v1200
    %v1537 = vunpack.c.h.b16 %v1200
    %v1538 = vunpack.c.l.b16 %v1201
    %v1539 = vunpack.c.h.b16 %v1201
    %v1540 = vunpack.c.l.b16 %v1202
    %v1541 = vunpack.c.h.b16 %v1202
    %v1542 = vunpack.c.l.b16 %v1203
    %v1543 = vunpack.c.h.b16 %v1203
    %v1544 = vunpack.c.l.b16 %v1204
    %v1545 = vunpack.c.h.b16 %v1204
    %v1546 = vunpack.c.l.b16 %v1205
    %v1547 = vunpack.c.h.b16 %v1205
    %v1548 = vunpack.c.l.b16 %v1206
    %v1549 = vunpack.c.h.b16 %v1206
    %v1550 = vunpack.c.l.b16 %v1207
    %v1551 = vunpack.c.h.b16 %v1207
    %v1552 = vunpack.c.l.b16 %v1208
    %v1553 = vunpack.c.h.b16 %v1208
    %v1554 = vunpack.c.l.b16 %v1209
    %v1555 = vunpack.c.h.b16 %v1209
    %v1556 = vunpack.c.l.b16 %v1210
    %v1557 = vunpack.c.h.b16 %v1210
    %v1558 = vunpack.c.l.b16 %v1211
    %v1559 = vunpack.c.h.b16 %v1211
    %v1560 = vunpack.c.l.b16 %v1212
    %v1561 = vunpack.c.h.b16 %v1212
    %v1562 = vunpack.c.l.b16 %v1213
    %v1563 = vunpack.c.h.b16 %v1213
    %v1564 = vunpack.c.l.b16 %v1214
    %v1565 = vunpack.c.h.b16 %v1214
    %v1566 = vunpack.c.l.b16 %v1215
    %v1567 = vunpack.c.h.b16 %v1215
    %v1568 = vunpack.c.l.b16 %v1216
    %v1569 = vunpack.c.h.b16 %v1216
    %v1570 = vunpack.c.l.b16 %v1217
    %v1571 = vunpack.c.h.b16 %v1217
    %v1572 = vunpack.c.l.b16 %v1218
    %v1573 = vunpack.c.h.b16 %v1218
    %v1574 = vunpack.c.l.b16 %v1219
    %v1575 = vunpack.c.h.b16 %v1219
    %v1576 = vunpack.c.l.b16 %v1220
    %v1577 = vunpack.c.h.b16 %v1220
    %v1578 = vunpack.c.l.b16 %v1221
    %v1579 = vunpack.c.h.b16 %v1221
    %v1580 = vunpack.c.l.b16 %v1222
    %v1581 = vunpack.c.h.b16 %v1222
    %v1582 = vunpack.c.l.b16 %v1223
    %v1583 = vunpack.c.h.b16 %v1223
    %v1584 = vunpack.c.l.b16 %v1224
    %v1585 = vunpack.c.h.b16 %v1224
    %v1586 = vunpack.c.l.b16 %v1225
    %v1587 = vunpack.c.h.b16 %v1225
    %v1588 = vunpack.c.l.b16 %v1226
    %v1589 = vunpack.c.h.b16 %v1226
    %v1590 = vunpack.c.l.b16 %v1227
    %v1591 = vunpack.c.h.b16 %v1227
    %v1592 = vunpack.c.l.b16 %v1228
    %v1593 = vunpack.c.h.b16 %v1228
    %v1594 = vunpack.c.l.b16 %v1229
    %v1595 = vunpack.c.h.b16 %v1229
    %v1596 = vunpack.c.l.b16 %v1230
    %v1597 = vunpack.c.h.b16 %v1230
    %v1598 = vunpack.c.l.b16 %v1231
    %v1599 = vunpack.c.h.b16 %v1231
    %v1600 = vunpack.c.l.b16 %v1232
    %v1601 = vunpack.c.h.b16 %v1232
    %v1602 = vunpack.c.l.b16 %v1233
    %v1603 = vunpack.c.h.b16 %v1233
    %v1604 = vunpack.c.l.b16 %v1234
    %v1605 = vunpack.c.h.b16 %v1234
    %v1606 = vunpack.c.l.b16 %v1235
    %v1607 = vunpack.c.h.b16 %v1235
    %v1608 = vunpack.c.l.b16 %v1236
    %v1609 = vunpack.c.h.b16 %v1236
    %v1610 = vunpack.c.l.b16 %v1237
    %v1611 = vunpack.c.h.b16 %v1237
    %v1612 = vunpack.c.l.b16 %v1238
    %v1613 = vunpack.c.h.b16 %v1238
    %v1614 = vunpack.c.l.b16 %v1239
    %v1615 = vunpack.c.h.b16 %v1239
    %v1616 = vunpack.c.l.b16 %v1240
    %v1617 = vunpack.c.h.b16 %v1240
    %v1618 = vunpack.c.l.b16 %v1241
    %v1619 = vunpack.c.h.b16 %v1241
    %v1620 = vunpack.c.l.b16 %v1242
    %v1621 = vunpack.c.h.b16 %v1242
    %v1622 = vunpack.c.l.b16 %v1243
    %v1623 = vunpack.c.h.b16 %v1243
    %v1624 = vunpack.c.l.b16 %v1244
    %v1625 = vunpack.c.h.b16 %v1244
    %v1626 = vunpack.c.l.b16 %v1245
    %v1627 = vunpack.c.h.b16 %v1245
    %v1628 = vunpack.c.l.b16 %v1246
    %v1629 = vunpack.c.h.b16 %v1246
    %v1630 = vunpack.c.l.b16 %v1247
    %v1631 = vunpack.c.h.b16 %v1247
    %v1632 = vunpack.c.l.b16 %v1248
    %v1633 = vunpack.c.h.b16 %v1248
    %v1634 = vunpack.c.l.b16 %v1249
    %v1635 = vunpack.c.h.b16 %v1249
    %v1636 = vunpack.c.l.b16 %v1250
    %v1637 = vunpack.c.h.b16 %v1250
    %v1638 = vunpack.c.l.b16 %v1251
    %v1639 = vunpack.c.h.b16 %v1251
    %v1640 = vunpack.c.l.b16 %v1252
    %v1641 = vunpack.c.h.b16 %v1252
    %v1642 = vunpack.c.l.b16 %v1253
    %v1643 = vunpack.c.h.b16 %v1253
    %v1644 = vunpack.c.l.b16 %v1254
    %v1645 = vunpack.c.h.b16 %v1254
    %v1646 = vunpack.c.l.b16 %v1255
    %v1647 = vunpack.c.h.b16 %v1255
    %v1648 = vunpack.c.l.b16 %v1256
    %v1649 = vunpack.c.h.b16 %v1256
    %v1650 = vunpack.c.l.b16 %v1257
    %v1651 = vunpack.c.h.b16 %v1257
    %v1652 = vunpack.c.l.b16 %v1258
    %v1653 = vunpack.c.h.b16 %v1258
    %v1654 = vunpack.c.l.b16 %v1259
    %v1655 = vunpack.c.h.b16 %v1259
    %v1656 = vunpack.c.l.b16 %v1260
    %v1657 = vunpack.c.h.b16 %v1260
    %v1658 = vunpack.c.l.b16 %v1261
    %v1659 = vunpack.c.h.b16 %v1261
    %v1660 = vunpack.c.l.b16 %v1262
    %v1661 = vunpack.c.h.b16 %v1262
    %v1662 = vunpack.c.l.b16 %v1263
    %v1663 = vunpack.c.h.b16 %v1263
    %v1664 = vunpack.c.l.b16 %v1264
    %v1665 = vunpack.c.h.b16 %v1264
    %v1666 = vunpack.c.l.b16 %v1265
    %v1667 = vunpack.c.h.b16 %v1265
    %v1668 = vunpack.c.l.b16 %v1266
    %v1669 = vunpack.c.h.b16 %v1266
    %v1670 = vunpack.c.l.b16 %v1267
    %v1671 = vunpack.c.h.b16 %v1267
    %v1672 = vunpack.c.l.b16 %v1268
    %v1673 = vunpack.c.h.b16 %v1268
    %v1674 = vunpack.c.l.b16 %v1269
    %v1675 = vunpack.c.h.b16 %v1269
    %v1676 = vunpack.c.l.b16 %v1270
    %v1677 = vunpack.c.h.b16 %v1270
    %v1678 = vunpack.c.l.b16 %v1271
    %v1679 = vunpack.c.h.b16 %v1271
    %v1680 = vunpack.c.l.b16 %v1272
    %v1681 = vunpack.c.h.b16 %v1272
    %v1682 = vunpack.c.l.b16 %v1273
    %v1683 = vunpack.c.h.b16 %v1273
    %v1684 = vunpack.c.l.b16 %v1274
    %v1685 = vunpack.c.h.b16 %v1274
    %v1686 = vunpack.c.l.b16 %v1275
    %v1687 = vunpack.c.h.b16 %v1275
    %v1688 = vunpack.c.l.b16 %v1276
    %v1689 = vunpack.c.h.b16 %v1276
    %v1690 = vunpack.c.l.b16 %v1277
    %v1691 = vunpack.c.h.b16 %v1277
    %v1692 = vunpack.c.l.b16 %v1278
    %v1693 = vunpack.c.h.b16 %v1278
    %v1694 = vunpack.c.l.b16 %v1279
    %v1695 = vunpack.c.h.b16 %v1279
    %v1696 = vunpack.c.l.b16 %v1280
    %v1697 = vunpack.c.h.b16 %v1280
    %v1698 = vunpack.c.l.b16 %v1281
    %v1699 = vunpack.c.h.b16 %v1281
    %v1700 = vunpack.c.l.b16 %v1282
    %v1701 = vunpack.c.h.b16 %v1282
    %v1702 = vunpack.c.l.b16 %v1283
    %v1703 = vunpack.c.h.b16 %v1283
    %v1704 = vunpack.c.l.b16 %v1284
    %v1705 = vunpack.c.h.b16 %v1284
    %v1706 = vunpack.c.l.b16 %v1285
    %v1707 = vunpack.c.h.b16 %v1285
    %v1708 = vunpack.c.l.b16 %v1286
    %v1709 = vunpack.c.h.b16 %v1286
    %v1710 = vunpack.c.l.b16 %v1287
    %v1711 = vunpack.c.h.b16 %v1287
    %v1712 = vunpack.c.l.b16 %v1288
    %v1713 = vunpack.c.h.b16 %v1288
    %v1714 = vunpack.c.l.b16 %v1289
    %v1715 = vunpack.c.h.b16 %v1289
    %v1716 = vpack.c.b16 %v1468, %v1460
    %v1717 = vpack.c.b16 %v1469, %v1461
    %v1718 = vpack.c.b16 %v1470, %v1462
    %v1719 = vpack.c.b16 %v1471, %v1463
    %v1720 = vpack.c.b16 %v1472, %v1464
    %v1721 = vpack.c.b16 %v1473, %v1465
    %v1722 = vpack.c.b16 %v1474, %v1466
    %v1723 = vpack.c.b16 %v1475, %v1467
    %v1724 = vpack.c.b16 %v1484, %v1476
    %v1725 = vpack.c.b16 %v1485, %v1477
    %v1726 = vpack.c.b16 %v1486, %v1478
    %v1727 = vpack.c.b16 %v1487, %v1479
    %v1728 = vpack.c.b16 %v1488, %v1480
    %v1729 = vpack.c.b16 %v1489, %v1481
    %v1730 = vpack.c.b16 %v1490, %v1482
    %v1731 = vpack.c.b16 %v1491, %v1483
    %v1732 = vpack.c.b16 %v1500, %v1492
    %v1733 = vpack.c.b16 %v1501, %v1493
    %v1734 = vpack.c.b16 %v1502, %v1494
    %v1735 = vpack.c.b16 %v1503, %v1495
    %v1736 = vpack.c.b16 %v1504, %v1496
    %v1737 = vpack.c.b16 %v1505, %v1497
    %v1738 = vpack.c.b16 %v1506, %v1498
    %v1739 = vpack.c.b16 %v1507, %v1499
    %v1740 = vpack.c.b16 %v1516, %v1508
    %v1741 = vpack.c.b16 %v1517, %v1509
    %v1742 = vpack.c.b16 %v1518, %v1510
    %v1743 = vpack.c.b16 %v1519, %v1511
    %v1744 = vpack.c.b16 %v1520, %v1512
    %v1745 = vpack.c.b16 %v1521, %v1513
    %v1746 = vpack.c.b16 %v1522, %v1514
    %v1747 = vpack.c.b16 %v1523, %v1515
    %v1748 = vpack.c.b16 %v1532, %v1524
    %v1749 = vpack.c.b16 %v1533, %v1525
    %v1750 = vpack.c.b16 %v1534, %v1526
    %v1751 = vpack.c.b16 %v1535, %v1527
    %v1752 = vpack.c.b16 %v1536, %v1528
    %v1753 = vpack.c.b16 %v1537, %v1529
    %v1754 = vpack.c.b16 %v1538, %v1530
    %v1755 = vpack.c.b16 %v1539, %v1531
    %v1756 = vpack.c.b16 %v1548, %v1540
    %v1757 = vpack.c.b16 %v1549, %v1541
    %v1758 = vpack.c.b16 %v1550, %v1542
    %v1759 = vpack.c.b16 %v1551, %v1543
    %v1760 = vpack.c.b16 %v1552, %v1544
    %v1761 = vpack.c.b16 %v1553, %v1545
    %v1762 = vpack.c.b16 %v1554, %v1546
    %v1763 = vpack.c.b16 %v1555, %v1547
    %v1764 = vpack.c.b16 %v1564, %v1556
    %v1765 = vpack.c.b16 %v1565, %v1557
    %v1766 = vpack.c.b16 %v1566, %v1558
    %v1767 = vpack.c.b16 %v1567, %v1559
    %v1768 = vpack.c.b16 %v1568, %v1560
    %v1769 = vpack.c.b16 %v1569, %v1561
    %v1770 = vpack.c.b16 %v1570, %v1562
    %v1771 = vpack.c.b16 %v1571, %v1563
    %v1772 = vpack.c.b16 %v1580, %v1572
    %v1773 = vpack.c.b16 %v1581, %v1573
    %v1774 = vpack.c.b16 %v1582, %v1574
    %v1775 = vpack.c.b16 %v1583, %v1575
    %v1776 = vpack.c.b16 %v1584, %v1576
    %v1777 = vpack.c.b16 %v1585, %v1577
    %v1778 = vpack.c.b16 %v1586, %v1578
    %v1779 = vpack.c.b16 %v1587, %v1579
    %v1780 = vpack.c.b16 %v1596, %v1588
    %v1781 = vpack.c.b16 %v1597, %v1589
    %v1782 = vpack.c.b16 %v1598, %v1590
    %v1783 = vpack.c.b16 %v1599, %v1591
    %v1784 = vpack.c.b16 %v1600, %v1592
    %v1785 = vpack.c.b16 %v1601, %v1593
    %v1786 = vpack.c.b16 %v1602, %v1594
    %v1787 = vpack.c.b16 %v1603, %v1595
    %v1788 = vpack.c.b16 %v1612, %v1604
    %v1789 = vpack.c.b16 %v1613, %v1605
    %v1790 = vpack.c.b16 %v1614, %v1606
    %v1791 = vpack.c.b16 %v1615, %v1607
    %v1792 = vpack.c.b16 %v1616, %v1608
    %v1793 = vpack.c.b16 %v1617, %v1609
    %v1794 = vpack.c.b16 %v1618, %v1610
    %v1795 = vpack.c.b16 %v1619, %v1611
    %v1796 = vpack.c.b16 %v1628, %v1620
    %v1797 = vpack.c.b16 %v1629, %v1621
    %v1798 = vpack.c.b16 %v1630, %v1622
    %v1799 = vpack.c.b16 %v1631, %v1623
    %v1800 = vpack.c.b16 %v1632, %v1624
    %v1801 = vpack.c.b16 %v1633, %v1625
    %v1802 = vpack.c.b16 %v1634, %v1626
    %v1803 = vpack.c.b16 %v1635, %v1627
    %v1804 = vpack.c.b16 %v1644, %v1636
    %v1805 = vpack.c.b16 %v1645, %v1637
    %v1806 = vpack.c.b16 %v1646, %v1638
    %v1807 = vpack.c.b16 %v1647, %v1639
    %v1808 = vpack.c.b16 %v1648, %v1640
    %v1809 = vpack.c.b16 %v1649, %v1641
    %v1810 = vpack.c.b16 %v1650, %v1642
    %v1811 = vpack.c.b16 %v1651, %v1643
    %v1812 = vpack.c.b16 %v1660, %v1652
    %v1813 = vpack.c.b16 %v1661, %v1653
    %v1814 = vpack.c.b16 %v1662, %v1654
    %v1815 = vpack.c.b16 %v1663, %v1655
    %v1816 = vpack.c.b16 %v1664, %v1656
    %v1817 = vpack.c.b16 %v1665, %v1657
    %v1818 = vpack.c.b16 %v1666, %v1658
    %v1819 = vpack.c.b16 %v1667, %v1659
    %v1820 = vpack.c.b16 %v1676, %v1668
    %v1821 = vpack.c.b16 %v1677, %v1669
    %v1822 = vpack.c.b16 %v1678, %v1670
    %v1823 = vpack.c.b16 %v1679, %v1671
    %v1824 = vpack.c.b16 %v1680, %v1672
    %v1825 = vpack.c.b16 %v1681, %v1673
    %v1826 = vpack.c.b16 %v1682, %v1674
    %v1827 = vpack.c.b16 %v1683, %v1675
    %v1828 = vpack.c.b16 %v1692, %v1684
    %v1829 = vpack.c.b16 %v1693, %v1685
    %v1830 = vpack.c.b16 %v1694, %v1686
    %v1831 = vpack.c.b16 %v1695, %v1687
    %v1832 = vpack.c.b16 %v1696, %v1688
    %v1833 = vpack.c.b16 %v1697, %v1689
    %v1834 = vpack.c.b16 %v1698, %v1690
    %v1835 = vpack.c.b16 %v1699, %v1691
    %v1836 = vpack.c.b16 %v1708, %v1700
    %v1837 = vpack.c.b16 %v1709, %v1701
    %v1838 = vpack.c.b16 %v1710, %v1702
    %v1839 = vpack.c.b16 %v1711, %v1703
    %v1840 = vpack.c.b16 %v1712, %v1704
    %v1841 = vpack.c.b16 %v1713, %v1705
    %v1842 = vpack.c.b16 %v1714, %v1706
    %v1843 = vpack.c.b16 %v1715, %v1707
    %1972 = vmatprep.subr.bf16.mxu0 %v1717
    %1973 = vmatpush1.bf16.msra.mxu0 %v1716
    %1974 = vmatprep.subr.bf16.mxu0 %v1725
    %1975 = vmatpush1.bf16.msra.mxu0 %v1724
    %1976 = vmatprep.subr.bf16.mxu0 %v1733
    %1977 = vmatpush1.bf16.msra.mxu0 %v1732
    %1978 = vmatprep.subr.bf16.mxu0 %v1741
    %1979 = vmatpush1.bf16.msra.mxu0 %v1740
    %1980 = vmatprep.subr.bf16.mxu0 %v1749
    %1981 = vmatpush1.bf16.msra.mxu0 %v1748
    %1982 = vmatprep.subr.bf16.mxu0 %v1757
    %1983 = vmatpush1.bf16.msra.mxu0 %v1756
    %1984 = vmatprep.subr.bf16.mxu0 %v1765
    %1985 = vmatpush1.bf16.msra.mxu0 %v1764
    %1986 = vmatprep.subr.bf16.mxu0 %v1773
    %1987 = vmatpush1.bf16.msra.mxu0 %v1772
    %1988 = vmatprep.subr.bf16.mxu0 %v1781
    %1989 = vmatpush1.bf16.msra.mxu0 %v1780
    %1990 = vmatprep.subr.bf16.mxu0 %v1789
    %1991 = vmatpush1.bf16.msra.mxu0 %v1788
    %1992 = vmatprep.subr.bf16.mxu0 %v1797
    %1993 = vmatpush1.bf16.msra.mxu0 %v1796
    %1994 = vmatprep.subr.bf16.mxu0 %v1805
    %1995 = vmatpush1.bf16.msra.mxu0 %v1804
    %1996 = vmatprep.subr.bf16.mxu0 %v1813
    %1997 = vmatpush1.bf16.msra.mxu0 %v1812
    %1998 = vmatprep.subr.bf16.mxu0 %v1821
    %1999 = vmatpush1.bf16.msra.mxu0 %v1820
    %2000 = vmatprep.subr.bf16.mxu0 %v1829
    %2001 = vmatpush1.bf16.msra.mxu0 %v1828
    %2002 = vmatprep.subr.bf16.mxu0 %v1837
    %2003 = vmatpush1.bf16.msra.mxu0 %v1836
    %2004 = vmatprep.mubr.bf16.mxu0 %v1147
    %2005 = vmatmul.mubr.bf16.gmra.mrb[0].mxu0 %v1146
    %v2006 = vpop.f32.mrb[0].mxu0
    %v2007 = vadd.f32 %v1295, %v2006
    %v2008 = vpop.f32.mrb[0].mxu0
    %v2009 = vadd.f32 %v1299, %v2008
    %v2010 = vpop.f32.mrb[0].mxu0
    %v2011 = vadd.f32 %v1295, %v2010
    %v2012 = vpop.f32.mrb[0].mxu0
    %v2013 = vadd.f32 %v1299, %v2012
    %2014 = vmatprep.mubr.bf16.mxu0 %v1149
    %2015 = vmatmul.mubr.bf16.gmra.mrb[0].mxu0 %v1148
    %v2016 = vpop.f32.mrb[0].mxu0
    %v2017 = vadd.f32 %v1295, %v2016
    %v2018 = vpop.f32.mrb[0].mxu0
    %v2019 = vadd.f32 %v1299, %v2018
    %v2020 = vpop.f32.mrb[0].mxu0
    %v2021 = vadd.f32 %v1295, %v2020
    %v2022 = vpop.f32.mrb[0].mxu0
    %v2023 = vadd.f32 %v1299, %v2022
    %2024 = vmatprep.mubr.bf16.mxu0 %v1151
    %2025 = vmatmul.mubr.bf16.gmra.mrb[0].mxu0 %v1150
    %v2026 = vpop.f32.mrb[0].mxu0
    %v2027 = vadd.f32 %v1295, %v2026
    %v2028 = vpop.f32.mrb[0].mxu0
    %v2029 = vadd.f32 %v1299, %v2028
    %v2030 = vpop.f32.mrb[0].mxu0
    %v2031 = vadd.f32 %v1295, %v2030
    %v2032 = vpop.f32.mrb[0].mxu0
    %v2033 = vadd.f32 %v1299, %v2032
    %2034 = vmatprep.mubr.bf16.mxu0 %v1153
    %2035 = vmatmul.mubr.bf16.gmra.mrb[0].mxu0 %v1152
    %v2036 = vpop.f32.mrb[0].mxu0
    %v2037 = vadd.f32 %v1295, %v2036
    %v2038 = vpop.f32.mrb[0].mxu0
    %v2039 = vadd.f32 %v1299, %v2038
    %v2040 = vpop.f32.mrb[0].mxu0
    %v2041 = vadd.f32 %v1295, %v2040
    %v2042 = vpop.f32.mrb[0].mxu0
    %v2043 = vadd.f32 %v1299, %v2042
    %2044 = vmatprep.mubr.bf16.mxu0 %v1155
    %2045 = vmatmul.mubr.bf16.gmra.mrb[0].mxu0 %v1154
    %v2046 = vpop.f32.mrb[0].mxu0
    %v2047 = vadd.f32 %v1295, %v2046
    %v2048 = vpop.f32.mrb[0].mxu0
    %v2049 = vadd.f32 %v1299, %v2048
    %v2050 = vpop.f32.mrb[0].mxu0
    %v2051 = vadd.f32 %v1295, %v2050
    %v2052 = vpop.f32.mrb[0].mxu0
    %v2053 = vadd.f32 %v1299, %v2052
    %2054 = vmatprep.mubr.bf16.mxu0 %v1157
    %2055 = vmatmul.mubr.bf16.gmra.mrb[0].mxu0 %v1156
    %v2056 = vpop.f32.mrb[0].mxu0
    %v2057 = vadd.f32 %v1295, %v2056
    %v2058 = vpop.f32.mrb[0].mxu0
    %v2059 = vadd.f32 %v1299, %v2058
    %v2060 = vpop.f32.mrb[0].mxu0
    %v2061 = vadd.f32 %v1295, %v2060
    %v2062 = vpop.f32.mrb[0].mxu0
    %v2063 = vadd.f32 %v1299, %v2062
    %2064 = vmatprep.mubr.bf16.mxu0 %v1159
    %2065 = vmatmul.mubr.bf16.gmra.mrb[0].mxu0 %v1158
    %v2066 = vpop.f32.mrb[0].mxu0
    %v2067 = vadd.f32 %v1295, %v2066
    %v2068 = vpop.f32.mrb[0].mxu0
    %v2069 = vadd.f32 %v1299, %v2068
    %v2070 = vpop.f32.mrb[0].mxu0
    %v2071 = vadd.f32 %v1295, %v2070
    %v2072 = vpop.f32.mrb[0].mxu0
    %v2073 = vadd.f32 %v1299, %v2072
    %2074 = vmatprep.mubr.bf16.mxu0 %v1161
    %2075 = vmatmul.mubr.bf16.gmra.mrb[0].mxu0 %v1160
    %v2076 = vpop.f32.mrb[0].mxu0
    %v2077 = vadd.f32 %v1295, %v2076
    %v2078 = vpop.f32.mrb[0].mxu0
    %v2079 = vadd.f32 %v1299, %v2078
    %v2080 = vpop.f32.mrb[0].mxu0
    %v2081 = vadd.f32 %v1295, %v2080
    %v2082 = vpop.f32.mrb[0].mxu0
    %v2083 = vadd.f32 %v1299, %v2082
    %2084 = vdwg.mxu0
    %2085 = vmatprep.subr.bf16.mxu0 %v1719
    %2086 = vmatpush1.bf16.msra.mxu0 %v1718
    %2087 = vmatprep.subr.bf16.mxu0 %v1727
    %2088 = vmatpush1.bf16.msra.mxu0 %v1726
    %2089 = vmatprep.subr.bf16.mxu0 %v1735
    %2090 = vmatpush1.bf16.msra.mxu0 %v1734
    %2091 = vmatprep.subr.bf16.mxu0 %v1743
    %2092 = vmatpush1.bf16.msra.mxu0 %v1742
    %2093 = vmatprep.subr.bf16.mxu0 %v1751
    %2094 = vmatpush1.bf16.msra.mxu0 %v1750
    %2095 = vmatprep.subr.bf16.mxu0 %v1759
    %2096 = vmatpush1.bf16.msra.mxu0 %v1758
    %2097 = vmatprep.subr.bf16.mxu0 %v1767
    %2098 = vmatpush1.bf16.msra.mxu0 %v1766
    %2099 = vmatprep.subr.bf16.mxu0 %v1775
    %2100 = vmatpush1.bf16.msra.mxu0 %v1774
    %2101 = vmatprep.subr.bf16.mxu0 %v1783
    %2102 = vmatpush1.bf16.msra.mxu0 %v1782
    %2103 = vmatprep.subr.bf16.mxu0 %v1791
    %2104 = vmatpush1.bf16.msra.mxu0 %v1790
    %2105 = vmatprep.subr.bf16.mxu0 %v1799
    %2106 = vmatpush1.bf16.msra.mxu0 %v1798
    %2107 = vmatprep.subr.bf16.mxu0 %v1807
    %2108 = vmatpush1.bf16.msra.mxu0 %v1806
    %2109 = vmatprep.subr.bf16.mxu0 %v1815
    %2110 = vmatpush1.bf16.msra.mxu0 %v1814
    %2111 = vmatprep.subr.bf16.mxu0 %v1823
    %2112 = vmatpush1.bf16.msra.mxu0 %v1822
    %2113 = vmatprep.subr.bf16.mxu0 %v1831
    %2114 = vmatpush1.bf16.msra.mxu0 %v1830
    %2115 = vmatprep.subr.bf16.mxu0 %v1839
    %2116 = vmatpush1.bf16.msra.mxu0 %v1838
    %2117 = vmatprep.mubr.bf16.mxu0 %v1147
    %2118 = vmatmul.mubr.bf16.gmra.mrb[0].mxu0 %v1146
    %v2119 = vpop.f32.mrb[0].mxu0
    %v2120 = vadd.f32 %v1303, %v2119
    %v2121 = vpop.f32.mrb[0].mxu0
    %v2122 = vadd.f32 %v1307, %v2121
    %v2123 = vpop.f32.mrb[0].mxu0
    %v2124 = vadd.f32 %v1303, %v2123
    %v2125 = vpop.f32.mrb[0].mxu0
    %v2126 = vadd.f32 %v1307, %v2125
    %2127 = vmatprep.mubr.bf16.mxu0 %v1149
    %2128 = vmatmul.mubr.bf16.gmra.mrb[0].mxu0 %v1148
    %v2129 = vpop.f32.mrb[0].mxu0
    %v2130 = vadd.f32 %v1303, %v2129
    %v2131 = vpop.f32.mrb[0].mxu0
    %v2132 = vadd.f32 %v1307, %v2131
    %v2133 = vpop.f32.mrb[0].mxu0
    %v2134 = vadd.f32 %v1303, %v2133
    %v2135 = vpop.f32.mrb[0].mxu0
    %v2136 = vadd.f32 %v1307, %v2135
    %2137 = vmatprep.mubr.bf16.mxu0 %v1151
    %2138 = vmatmul.mubr.bf16.gmra.mrb[0].mxu0 %v1150
    %v2139 = vpop.f32.mrb[0].mxu0
    %v2140 = vadd.f32 %v1303, %v2139
    %v2141 = vpop.f32.mrb[0].mxu0
    %v2142 = vadd.f32 %v1307, %v2141
    %v2143 = vpop.f32.mrb[0].mxu0
    %v2144 = vadd.f32 %v1303, %v2143
    %v2145 = vpop.f32.mrb[0].mxu0
    %v2146 = vadd.f32 %v1307, %v2145
    %2147 = vmatprep.mubr.bf16.mxu0 %v1153
    %2148 = vmatmul.mubr.bf16.gmra.mrb[0].mxu0 %v1152
    %v2149 = vpop.f32.mrb[0].mxu0
    %v2150 = vadd.f32 %v1303, %v2149
    %v2151 = vpop.f32.mrb[0].mxu0
    %v2152 = vadd.f32 %v1307, %v2151
    %v2153 = vpop.f32.mrb[0].mxu0
    %v2154 = vadd.f32 %v1303, %v2153
    %v2155 = vpop.f32.mrb[0].mxu0
    %v2156 = vadd.f32 %v1307, %v2155
    %2157 = vmatprep.mubr.bf16.mxu0 %v1155
    %2158 = vmatmul.mubr.bf16.gmra.mrb[0].mxu0 %v1154
    %v2159 = vpop.f32.mrb[0].mxu0
    %v2160 = vadd.f32 %v1303, %v2159
    %v2161 = vpop.f32.mrb[0].mxu0
    %v2162 = vadd.f32 %v1307, %v2161
    %v2163 = vpop.f32.mrb[0].mxu0
    %v2164 = vadd.f32 %v1303, %v2163
    %v2165 = vpop.f32.mrb[0].mxu0
    %v2166 = vadd.f32 %v1307, %v2165
    %2167 = vmatprep.mubr.bf16.mxu0 %v1157
    %2168 = vmatmul.mubr.bf16.gmra.mrb[0].mxu0 %v1156
    %v2169 = vpop.f32.mrb[0].mxu0
    %v2170 = vadd.f32 %v1303, %v2169
    %v2171 = vpop.f32.mrb[0].mxu0
    %v2172 = vadd.f32 %v1307, %v2171
    %v2173 = vpop.f32.mrb[0].mxu0
    %v2174 = vadd.f32 %v1303, %v2173
    %v2175 = vpop.f32.mrb[0].mxu0
    %v2176 = vadd.f32 %v1307, %v2175
    %2177 = vmatprep.mubr.bf16.mxu0 %v1159
    %2178 = vmatmul.mubr.bf16.gmra.mrb[0].mxu0 %v1158
    %v2179 = vpop.f32.mrb[0].mxu0
    %v2180 = vadd.f32 %v1303, %v2179
    %v2181 = vpop.f32.mrb[0].mxu0
    %v2182 = vadd.f32 %v1307, %v2181
    %v2183 = vpop.f32.mrb[0].mxu0
    %v2184 = vadd.f32 %v1303, %v2183
    %v2185 = vpop.f32.mrb[0].mxu0
    %v2186 = vadd.f32 %v1307, %v2185
    %2187 = vmatprep.mubr.bf16.mxu0 %v1161
    %2188 = vmatmul.mubr.bf16.gmra.mrb[0].mxu0 %v1160
    %v2189 = vpop.f32.mrb[0].mxu0
    %v2190 = vadd.f32 %v1303, %v2189
    %v2191 = vpop.f32.mrb[0].mxu0
    %v2192 = vadd.f32 %v1307, %v2191
    %v2193 = vpop.f32.mrb[0].mxu0
    %v2194 = vadd.f32 %v1303, %v2193
    %v2195 = vpop.f32.mrb[0].mxu0
    %v2196 = vadd.f32 %v1307, %v2195
    %2197 = vdwg.mxu0
    %2198 = vmatprep.subr.bf16.mxu0 %v1721
    %2199 = vmatpush1.bf16.msra.mxu0 %v1720
    %2200 = vmatprep.subr.bf16.mxu0 %v1729
    %2201 = vmatpush1.bf16.msra.mxu0 %v1728
    %2202 = vmatprep.subr.bf16.mxu0 %v1737
    %2203 = vmatpush1.bf16.msra.mxu0 %v1736
    %2204 = vmatprep.subr.bf16.mxu0 %v1745
    %2205 = vmatpush1.bf16.msra.mxu0 %v1744
    %2206 = vmatprep.subr.bf16.mxu0 %v1753
    %2207 = vmatpush1.bf16.msra.mxu0 %v1752
    %2208 = vmatprep.subr.bf16.mxu0 %v1761
    %2209 = vmatpush1.bf16.msra.mxu0 %v1760
    %2210 = vmatprep.subr.bf16.mxu0 %v1769
    %2211 = vmatpush1.bf16.msra.mxu0 %v1768
    %2212 = vmatprep.subr.bf16.mxu0 %v1777
    %2213 = vmatpush1.bf16.msra.mxu0 %v1776
    %2214 = vmatprep.subr.bf16.mxu0 %v1785
    %2215 = vmatpush1.bf16.msra.mxu0 %v1784
    %2216 = vmatprep.subr.bf16.mxu0 %v1793
    %2217 = vmatpush1.bf16.msra.mxu0 %v1792
    %2218 = vmatprep.subr.bf16.mxu0 %v1801
    %2219 = vmatpush1.bf16.msra.mxu0 %v1800
    %2220 = vmatprep.subr.bf16.mxu0 %v1809
    %2221 = vmatpush1.bf16.msra.mxu0 %v1808
    %2222 = vmatprep.subr.bf16.mxu0 %v1817
    %2223 = vmatpush1.bf16.msra.mxu0 %v1816
    %2224 = vmatprep.subr.bf16.mxu0 %v1825
    %2225 = vmatpush1.bf16.msra.mxu0 %v1824
    %2226 = vmatprep.subr.bf16.mxu0 %v1833
    %2227 = vmatpush1.bf16.msra.mxu0 %v1832
    %2228 = vmatprep.subr.bf16.mxu0 %v1841
    %2229 = vmatpush1.bf16.msra.mxu0 %v1840
    %2230 = vmatprep.mubr.bf16.mxu0 %v1147
    %2231 = vmatmul.mubr.bf16.gmra.mrb[0].mxu0 %v1146
    %v2232 = vpop.f32.mrb[0].mxu0
    %v2233 = vadd.f32 %v1311, %v2232
    %v2234 = vpop.f32.mrb[0].mxu0
    %v2235 = vadd.f32 %v1315, %v2234
    %v2236 = vpop.f32.mrb[0].mxu0
    %v2237 = vadd.f32 %v1311, %v2236
    %v2238 = vpop.f32.mrb[0].mxu0
    %v2239 = vadd.f32 %v1315, %v2238
    %2240 = vmatprep.mubr.bf16.mxu0 %v1149
    %2241 = vmatmul.mubr.bf16.gmra.mrb[0].mxu0 %v1148
    %v2242 = vpop.f32.mrb[0].mxu0
    %v2243 = vadd.f32 %v1311, %v2242
    %v2244 = vpop.f32.mrb[0].mxu0
    %v2245 = vadd.f32 %v1315, %v2244
    %v2246 = vpop.f32.mrb[0].mxu0
    %v2247 = vadd.f32 %v1311, %v2246
    %v2248 = vpop.f32.mrb[0].mxu0
    %v2249 = vadd.f32 %v1315, %v2248
    %2250 = vmatprep.mubr.bf16.mxu0 %v1151
    %2251 = vmatmul.mubr.bf16.gmra.mrb[0].mxu0 %v1150
    %v2252 = vpop.f32.mrb[0].mxu0
    %v2253 = vadd.f32 %v1311, %v2252
    %v2254 = vpop.f32.mrb[0].mxu0
    %v2255 = vadd.f32 %v1315, %v2254
    %v2256 = vpop.f32.mrb[0].mxu0
    %v2257 = vadd.f32 %v1311, %v2256
    %v2258 = vpop.f32.mrb[0].mxu0
    %v2259 = vadd.f32 %v1315, %v2258
    %2260 = vmatprep.mubr.bf16.mxu0 %v1153
    %2261 = vmatmul.mubr.bf16.gmra.mrb[0].mxu0 %v1152
    %v2262 = vpop.f32.mrb[0].mxu0
    %v2263 = vadd.f32 %v1311, %v2262
    %v2264 = vpop.f32.mrb[0].mxu0
    %v2265 = vadd.f32 %v1315, %v2264
    %v2266 = vpop.f32.mrb[0].mxu0
    %v2267 = vadd.f32 %v1311, %v2266
    %v2268 = vpop.f32.mrb[0].mxu0
    %v2269 = vadd.f32 %v1315, %v2268
    %2270 = vmatprep.mubr.bf16.mxu0 %v1155
    %2271 = vmatmul.mubr.bf16.gmra.mrb[0].mxu0 %v1154
    %v2272 = vpop.f32.mrb[0].mxu0
    %v2273 = vadd.f32 %v1311, %v2272
    %v2274 = vpop.f32.mrb[0].mxu0
    %v2275 = vadd.f32 %v1315, %v2274
    %v2276 = vpop.f32.mrb[0].mxu0
    %v2277 = vadd.f32 %v1311, %v2276
    %v2278 = vpop.f32.mrb[0].mxu0
    %v2279 = vadd.f32 %v1315, %v2278
    %2280 = vmatprep.mubr.bf16.mxu0 %v1157
    %2281 = vmatmul.mubr.bf16.gmra.mrb[0].mxu0 %v1156
    %v2282 = vpop.f32.mrb[0].mxu0
    %v2283 = vadd.f32 %v1311, %v2282
    %v2284 = vpop.f32.mrb[0].mxu0
    %v2285 = vadd.f32 %v1315, %v2284
    %v2286 = vpop.f32.mrb[0].mxu0
    %v2287 = vadd.f32 %v1311, %v2286
    %v2288 = vpop.f32.mrb[0].mxu0
    %v2289 = vadd.f32 %v1315, %v2288
    %2290 = vmatprep.mubr.bf16.mxu0 %v1159
    %2291 = vmatmul.mubr.bf16.gmra.mrb[0].mxu0 %v1158
    %v2292 = vpop.f32.mrb[0].mxu0
    %v2293 = vadd.f32 %v1311, %v2292
    %v2294 = vpop.f32.mrb[0].mxu0
    %v2295 = vadd.f32 %v1315, %v2294
    %v2296 = vpop.f32.mrb[0].mxu0
    %v2297 = vadd.f32 %v1311, %v2296
    %v2298 = vpop.f32.mrb[0].mxu0
    %v2299 = vadd.f32 %v1315, %v2298
    %2300 = vmatprep.mubr.bf16.mxu0 %v1161
    %2301 = vmatmul.mubr.bf16.gmra.mrb[0].mxu0 %v1160
    %v2302 = vpop.f32.mrb[0].mxu0
    %v2303 = vadd.f32 %v1311, %v2302
    %v2304 = vpop.f32.mrb[0].mxu0
    %v2305 = vadd.f32 %v1315, %v2304
    %v2306 = vpop.f32.mrb[0].mxu0
    %v2307 = vadd.f32 %v1311, %v2306
    %v2308 = vpop.f32.mrb[0].mxu0
    %v2309 = vadd.f32 %v1315, %v2308
    %2310 = vdwg.mxu0
    %2311 = vmatprep.subr.bf16.mxu0 %v1723
    %2312 = vmatpush1.bf16.msra.mxu0 %v1722
    %2313 = vmatprep.subr.bf16.mxu0 %v1731
    %2314 = vmatpush1.bf16.msra.mxu0 %v1730
    %2315 = vmatprep.subr.bf16.mxu0 %v1739
    %2316 = vmatpush1.bf16.msra.mxu0 %v1738
    %2317 = vmatprep.subr.bf16.mxu0 %v1747
    %2318 = vmatpush1.bf16.msra.mxu0 %v1746
    %2319 = vmatprep.subr.bf16.mxu0 %v1755
    %2320 = vmatpush1.bf16.msra.mxu0 %v1754
    %2321 = vmatprep.subr.bf16.mxu0 %v1763
    %2322 = vmatpush1.bf16.msra.mxu0 %v1762
    %2323 = vmatprep.subr.bf16.mxu0 %v1771
    %2324 = vmatpush1.bf16.msra.mxu0 %v1770
    %2325 = vmatprep.subr.bf16.mxu0 %v1779
    %2326 = vmatpush1.bf16.msra.mxu0 %v1778
    %2327 = vmatprep.subr.bf16.mxu0 %v1787
    %2328 = vmatpush1.bf16.msra.mxu0 %v1786
    %2329 = vmatprep.subr.bf16.mxu0 %v1795
    %2330 = vmatpush1.bf16.msra.mxu0 %v1794
    %2331 = vmatprep.subr.bf16.mxu0 %v1803
    %2332 = vmatpush1.bf16.msra.mxu0 %v1802
    %2333 = vmatprep.subr.bf16.mxu0 %v1811
    %2334 = vmatpush1.bf16.msra.mxu0 %v1810
    %2335 = vmatprep.subr.bf16.mxu0 %v1819
    %2336 = vmatpush1.bf16.msra.mxu0 %v1818
    %2337 = vmatprep.subr.bf16.mxu0 %v1827
    %2338 = vmatpush1.bf16.msra.mxu0 %v1826
    %2339 = vmatprep.subr.bf16.mxu0 %v1835
    %2340 = vmatpush1.bf16.msra.mxu0 %v1834
    %2341 = vmatprep.subr.bf16.mxu0 %v1843
    %2342 = vmatpush1.bf16.msra.mxu0 %v1842
    %2343 = vmatprep.mubr.bf16.mxu0 %v1147
    %2344 = vmatmul.mubr.bf16.gmra.mrb[0].mxu0 %v1146
    %v2345 = vpop.f32.mrb[0].mxu0
    %v2346 = vadd.f32 %v1319, %v2345
    %v2347 = vpop.f32.mrb[0].mxu0
    %v2348 = vadd.f32 %v1323, %v2347
    %v2349 = vpop.f32.mrb[0].mxu0
    %v2350 = vadd.f32 %v1319, %v2349
    %v2351 = vpop.f32.mrb[0].mxu0
    %v2352 = vadd.f32 %v1323, %v2351
    %2353 = vmatprep.mubr.bf16.mxu0 %v1149
    %2354 = vmatmul.mubr.bf16.gmra.mrb[0].mxu0 %v1148
    %v2355 = vpop.f32.mrb[0].mxu0
    %v2356 = vadd.f32 %v1319, %v2355
    %v2357 = vpop.f32.mrb[0].mxu0
    %v2358 = vadd.f32 %v1323, %v2357
    %v2359 = vpop.f32.mrb[0].mxu0
    %v2360 = vadd.f32 %v1319, %v2359
    %v2361 = vpop.f32.mrb[0].mxu0
    %v2362 = vadd.f32 %v1323, %v2361
    %2363 = vmatprep.mubr.bf16.mxu0 %v1151
    %2364 = vmatmul.mubr.bf16.gmra.mrb[0].mxu0 %v1150
    %v2365 = vpop.f32.mrb[0].mxu0
    %v2366 = vadd.f32 %v1319, %v2365
    %v2367 = vpop.f32.mrb[0].mxu0
    %v2368 = vadd.f32 %v1323, %v2367
    %v2369 = vpop.f32.mrb[0].mxu0
    %v2370 = vadd.f32 %v1319, %v2369
    %v2371 = vpop.f32.mrb[0].mxu0
    %v2372 = vadd.f32 %v1323, %v2371
    %2373 = vmatprep.mubr.bf16.mxu0 %v1153
    %2374 = vmatmul.mubr.bf16.gmra.mrb[0].mxu0 %v1152
    %v2375 = vpop.f32.mrb[0].mxu0
    %v2376 = vadd.f32 %v1319, %v2375
    %v2377 = vpop.f32.mrb[0].mxu0
    %v2378 = vadd.f32 %v1323, %v2377
    %v2379 = vpop.f32.mrb[0].mxu0
    %v2380 = vadd.f32 %v1319, %v2379
    %v2381 = vpop.f32.mrb[0].mxu0
    %v2382 = vadd.f32 %v1323, %v2381
    %2383 = vmatprep.mubr.bf16.mxu0 %v1155
    %2384 = vmatmul.mubr.bf16.gmra.mrb[0].mxu0 %v1154
    %v2385 = vpop.f32.mrb[0].mxu0
    %v2386 = vadd.f32 %v1319, %v2385
    %v2387 = vpop.f32.mrb[0].mxu0
    %v2388 = vadd.f32 %v1323, %v2387
    %v2389 = vpop.f32.mrb[0].mxu0
    %v2390 = vadd.f32 %v1319, %v2389
    %v2391 = vpop.f32.mrb[0].mxu0
    %v2392 = vadd.f32 %v1323, %v2391
    %2393 = vmatprep.mubr.bf16.mxu0 %v1157
    %2394 = vmatmul.mubr.bf16.gmra.mrb[0].mxu0 %v1156
    %v2395 = vpop.f32.mrb[0].mxu0
    %v2396 = vadd.f32 %v1319, %v2395
    %v2397 = vpop.f32.mrb[0].mxu0
    %v2398 = vadd.f32 %v1323, %v2397
    %v2399 = vpop.f32.mrb[0].mxu0
    %v2400 = vadd.f32 %v1319, %v2399
    %v2401 = vpop.f32.mrb[0].mxu0
    %v2402 = vadd.f32 %v1323, %v2401
    %2403 = vmatprep.mubr.bf16.mxu0 %v1159
    %2404 = vmatmul.mubr.bf16.gmra.mrb[0].mxu0 %v1158
    %v2405 = vpop.f32.mrb[0].mxu0
    %v2406 = vadd.f32 %v1319, %v2405
    %v2407 = vpop.f32.mrb[0].mxu0
    %v2408 = vadd.f32 %v1323, %v2407
    %v2409 = vpop.f32.mrb[0].mxu0
    %v2410 = vadd.f32 %v1319, %v2409
    %v2411 = vpop.f32.mrb[0].mxu0
    %v2412 = vadd.f32 %v1323, %v2411
    %2413 = vmatprep.mubr.bf16.mxu0 %v1161
    %2414 = vmatmul.mubr.bf16.gmra.mrb[0].mxu0 %v1160
    %v2415 = vpop.f32.mrb[0].mxu0
    %v2416 = vadd.f32 %v1319, %v2415
    %v2417 = vpop.f32.mrb[0].mxu0
    %v2418 = vadd.f32 %v1323, %v2417
    %v2419 = vpop.f32.mrb[0].mxu0
    %v2420 = vadd.f32 %v1319, %v2419
    %v2421 = vpop.f32.mrb[0].mxu0
    %v2422 = vadd.f32 %v1323, %v2421
    %2423 = vdwg.mxu0
    %2424 = vst [vmem:[%s13] sm:$0xff] %v2007
    %2425 = vst [vmem:[%s13 + $0x8] sm:$0xff] %v2009
    %2426 = vst [vmem:[%s13 + $0x10] sm:$0xff] %v2120
    %2427 = vst [vmem:[%s13 + $0x18] sm:$0xff] %v2122
    %2428 = vst [vmem:[%s13 + $0x20] sm:$0xff] %v2233
    %2429 = vst [vmem:[%s13 + $0x28] sm:$0xff] %v2235
    %2430 = vst [vmem:[%s13 + $0x30] sm:$0xff] %v2346
    %2431 = vst [vmem:[%s13 + $0x38] sm:$0xff] %v2348
    %2432 = vst [vmem:[%s13 + $0x40] sm:$0xff] %v2011
    %2433 = vst [vmem:[%s13 + $0x48] sm:$0xff] %v2013
    %2434 = vst [vmem:[%s13 + $0x50] sm:$0xff] %v2124
    %2435 = vst [vmem:[%s13 + $0x58] sm:$0xff] %v2126
    %2436 = vst [vmem:[%s13 + $0x60] sm:$0xff] %v2237
    %2437 = vst [vmem:[%s13 + $0x68] sm:$0xff] %v2239
    %2438 = vst [vmem:[%s13 + $0x70] sm:$0xff] %v2350
    %2439 = vst [vmem:[%s13 + $0x78] sm:$0xff] %v2352
    %2440 = vst [vmem:[%s13 + $0x80] sm:$0xff] %v2017
    %2441 = vst [vmem:[%s13 + $0x88] sm:$0xff] %v2019
    %2442 = vst [vmem:[%s13 + $0x90] sm:$0xff] %v2130
    %2443 = vst [vmem:[%s13 + $0x98] sm:$0xff] %v2132
    %2444 = vst [vmem:[%s13 + $0xa0] sm:$0xff] %v2243
    %2445 = vst [vmem:[%s13 + $0xa8] sm:$0xff] %v2245
    %2446 = vst [vmem:[%s13 + $0xb0] sm:$0xff] %v2356
    %2447 = vst [vmem:[%s13 + $0xb8] sm:$0xff] %v2358
    %2448 = vst [vmem:[%s13 + $0xc0] sm:$0xff] %v2021
    %2449 = vst [vmem:[%s13 + $0xc8] sm:$0xff] %v2023
    %2450 = vst [vmem:[%s13 + $0xd0] sm:$0xff] %v2134
    %2451 = vst [vmem:[%s13 + $0xd8] sm:$0xff] %v2136
    %2452 = vst [vmem:[%s13 + $0xe0] sm:$0xff] %v2247
    %2453 = vst [vmem:[%s13 + $0xe8] sm:$0xff] %v2249
    %2454 = vst [vmem:[%s13 + $0xf0] sm:$0xff] %v2360
    %2455 = vst [vmem:[%s13 + $0xf8] sm:$0xff] %v2362
    %2456 = vst [vmem:[%s13 + $0x100] sm:$0xff] %v2027
    %2457 = vst [vmem:[%s13 + $0x108] sm:$0xff] %v2029
    %2458 = vst [vmem:[%s13 + $0x110] sm:$0xff] %v2140
    %2459 = vst [vmem:[%s13 + $0x118] sm:$0xff] %v2142
    %2460 = vst [vmem:[%s13 + $0x120] sm:$0xff] %v2253
    %2461 = vst [vmem:[%s13 + $0x128] sm:$0xff] %v2255
    %2462 = vst [vmem:[%s13 + $0x130] sm:$0xff] %v2366
    %2463 = vst [vmem:[%s13 + $0x138] sm:$0xff] %v2368
    %2464 = vst [vmem:[%s13 + $0x140] sm:$0xff] %v2031
    %2465 = vst [vmem:[%s13 + $0x148] sm:$0xff] %v2033
    %2466 = vst [vmem:[%s13 + $0x150] sm:$0xff] %v2144
    %2467 = vst [vmem:[%s13 + $0x158] sm:$0xff] %v2146
    %2468 = vst [vmem:[%s13 + $0x160] sm:$0xff] %v2257
    %2469 = vst [vmem:[%s13 + $0x168] sm:$0xff] %v2259
    %2470 = vst [vmem:[%s13 + $0x170] sm:$0xff] %v2370
    %2471 = vst [vmem:[%s13 + $0x178] sm:$0xff] %v2372
    %2472 = vst [vmem:[%s13 + $0x180] sm:$0xff] %v2037
    %2473 = vst [vmem:[%s13 + $0x188] sm:$0xff] %v2039
    %2474 = vst [vmem:[%s13 + $0x190] sm:$0xff] %v2150
    %2475 = vst [vmem:[%s13 + $0x198] sm:$0xff] %v2152
    %2476 = vst [vmem:[%s13 + $0x1a0] sm:$0xff] %v2263
    %2477 = vst [vmem:[%s13 + $0x1a8] sm:$0xff] %v2265
    %2478 = vst [vmem:[%s13 + $0x1b0] sm:$0xff] %v2376
    %2479 = vst [vmem:[%s13 + $0x1b8] sm:$0xff] %v2378
    %2480 = vst [vmem:[%s13 + $0x1c0] sm:$0xff] %v2041
    %2481 = vst [vmem:[%s13 + $0x1c8] sm:$0xff] %v2043
    %2482 = vst [vmem:[%s13 + $0x1d0] sm:$0xff] %v2154
    %2483 = vst [vmem:[%s13 + $0x1d8] sm:$0xff] %v2156
    %2484 = vst [vmem:[%s13 + $0x1e0] sm:$0xff] %v2267
    %2485 = vst [vmem:[%s13 + $0x1e8] sm:$0xff] %v2269
    %2486 = vst [vmem:[%s13 + $0x1f0] sm:$0xff] %v2380
    %2487 = vst [vmem:[%s13 + $0x1f8] sm:$0xff] %v2382
    %2488 = vst [vmem:[%s13 + $0x200] sm:$0xff] %v2047
    %2489 = vst [vmem:[%s13 + $0x208] sm:$0xff] %v2049
    %2490 = vst [vmem:[%s13 + $0x210] sm:$0xff] %v2160
    %2491 = vst [vmem:[%s13 + $0x218] sm:$0xff] %v2162
    %2492 = vst [vmem:[%s13 + $0x220] sm:$0xff] %v2273
    %2493 = vst [vmem:[%s13 + $0x228] sm:$0xff] %v2275
    %2494 = vst [vmem:[%s13 + $0x230] sm:$0xff] %v2386
    %2495 = vst [vmem:[%s13 + $0x238] sm:$0xff] %v2388
    %2496 = vst [vmem:[%s13 + $0x240] sm:$0xff] %v2051
    %2497 = vst [vmem:[%s13 + $0x248] sm:$0xff] %v2053
    %2498 = vst [vmem:[%s13 + $0x250] sm:$0xff] %v2164
    %2499 = vst [vmem:[%s13 + $0x258] sm:$0xff] %v2166
    %2500 = vst [vmem:[%s13 + $0x260] sm:$0xff] %v2277
    %2501 = vst [vmem:[%s13 + $0x268] sm:$0xff] %v2279
    %2502 = vst [vmem:[%s13 + $0x270] sm:$0xff] %v2390
    %2503 = vst [vmem:[%s13 + $0x278] sm:$0xff] %v2392
    %2504 = vst [vmem:[%s13 + $0x280] sm:$0xff] %v2057
    %2505 = vst [vmem:[%s13 + $0x288] sm:$0xff] %v2059
    %2506 = vst [vmem:[%s13 + $0x290] sm:$0xff] %v2170
    %2507 = vst [vmem:[%s13 + $0x298] sm:$0xff] %v2172
    %2508 = vst [vmem:[%s13 + $0x2a0] sm:$0xff] %v2283
    %2509 = vst [vmem:[%s13 + $0x2a8] sm:$0xff] %v2285
    %2510 = vst [vmem:[%s13 + $0x2b0] sm:$0xff] %v2396
    %2511 = vst [vmem:[%s13 + $0x2b8] sm:$0xff] %v2398
    %2512 = vst [vmem:[%s13 + $0x2c0] sm:$0xff] %v2061
    %2513 = vst [vmem:[%s13 + $0x2c8] sm:$0xff] %v2063
    %2514 = vst [vmem:[%s13 + $0x2d0] sm:$0xff] %v2174
    %2515 = vst [vmem:[%s13 + $0x2d8] sm:$0xff] %v2176
    %2516 = vst [vmem:[%s13 + $0x2e0] sm:$0xff] %v2287
    %2517 = vst [vmem:[%s13 + $0x2e8] sm:$0xff] %v2289
    %2518 = vst [vmem:[%s13 + $0x2f0] sm:$0xff] %v2400
    %2519 = vst [vmem:[%s13 + $0x2f8] sm:$0xff] %v2402
    %2520 = vst [vmem:[%s13 + $0x300] sm:$0xff] %v2067
    %2521 = vst [vmem:[%s13 + $0x308] sm:$0xff] %v2069
    %2522 = vst [vmem:[%s13 + $0x310] sm:$0xff] %v2180
    %2523 = vst [vmem:[%s13 + $0x318] sm:$0xff] %v2182
    %2524 = vst [vmem:[%s13 + $0x320] sm:$0xff] %v2293
    %2525 = vst [vmem:[%s13 + $0x328] sm:$0xff] %v2295
    %2526 = vst [vmem:[%s13 + $0x330] sm:$0xff] %v2406
    %2527 = vst [vmem:[%s13 + $0x338] sm:$0xff] %v2408
    %2528 = vst [vmem:[%s13 + $0x340] sm:$0xff] %v2071
    %2529 = vst [vmem:[%s13 + $0x348] sm:$0xff] %v2073
    %2530 = vst [vmem:[%s13 + $0x350] sm:$0xff] %v2184
    %2531 = vst [vmem:[%s13 + $0x358] sm:$0xff] %v2186
    %2532 = vst [vmem:[%s13 + $0x360] sm:$0xff] %v2297
    %2533 = vst [vmem:[%s13 + $0x368] sm:$0xff] %v2299
    %2534 = vst [vmem:[%s13 + $0x370] sm:$0xff] %v2410
    %2535 = vst [vmem:[%s13 + $0x378] sm:$0xff] %v2412
    %2536 = vst [vmem:[%s13 + $0x380] sm:$0xff] %v2077
    %2537 = vst [vmem:[%s13 + $0x388] sm:$0xff] %v2079
    %2538 = vst [vmem:[%s13 + $0x390] sm:$0xff] %v2190
    %2539 = vst [vmem:[%s13 + $0x398] sm:$0xff] %v2192
    %2540 = vst [vmem:[%s13 + $0x3a0] sm:$0xff] %v2303
    %2541 = vst [vmem:[%s13 + $0x3a8] sm:$0xff] %v2305
    %2542 = vst [vmem:[%s13 + $0x3b0] sm:$0xff] %v2416
    %2543 = vst [vmem:[%s13 + $0x3b8] sm:$0xff] %v2418
    %2544 = vst [vmem:[%s13 + $0x3c0] sm:$0xff] %v2081
    %2545 = vst [vmem:[%s13 + $0x3c8] sm:$0xff] %v2083
    %2546 = vst [vmem:[%s13 + $0x3d0] sm:$0xff] %v2194
    %2547 = vst [vmem:[%s13 + $0x3d8] sm:$0xff] %v2196
    %2548 = vst [vmem:[%s13 + $0x3e0] sm:$0xff] %v2307
    %2549 = vst [vmem:[%s13 + $0x3e8] sm:$0xff] %v2309
    %2550 = vst [vmem:[%s13 + $0x3f0] sm:$0xff] %v2420
    %2551 = vst [vmem:[%s13 + $0x3f8] sm:$0xff] %v2422
    // Predicated region
    $region66: #{duc_forward.1} parent=1 // pred_check
      _
    $region67: #{duc_forward.1} parent=1 // pred_check_branch
      %2553 = sbr.rel (0) target = $region69
    $region68: #{duc_forward.1} parent=1 // pred_region
      _
    $region69: #{duc_forward.1} parent=1 // pred_fallthru
      _
    // Predicated region
    $region70: #{duc_forward.1} parent=1 // pred_check
      _
    $region71: #{duc_forward.1} parent=1 // pred_check_branch
      %2555 = sbr.rel (0) target = $region73
    $region72: #{duc_forward.1} parent=1 // pred_region
      _
    $region73: #{duc_forward.1} parent=1 // pred_fallthru
      _
    %2556 = vsyncpa [#allocation3], 1
    %2557 = vsyncpa [#allocation5], 1

</llo_original>
